<compile_context>
chip_gen: v7x
topology: tpu7x:2x2x1
jax: 0.10.0
libtpu: 0.0.40
codegen_flags: <defaults>
</compile_context>

<pallas_src>
import functools

import jax
import jax.numpy as jnp
from jax.experimental import pallas as pl


# ---------------------------------------------------------------------------
# In-kernel helpers (pure jnp on traced values)
# ---------------------------------------------------------------------------

def _lstm_step(gx, h, c, whh, H):
    """One nn.LSTM step.  gx already contains x@Wih + (b_ih + b_hh)."""
    g = gx + jnp.dot(h, whh, preferred_element_type=jnp.float32)       # (Bt, 4H)
    # Two full-width EUP passes (sigmoid + tanh over all 4 gates), then slice.
    sig = jax.nn.sigmoid(g)
    th = jnp.tanh(g)
    c_new = sig[:, H:2 * H] * c + sig[:, 0:H] * th[:, 2 * H:3 * H]     # f*c + i*g
    h_new = sig[:, 3 * H:4 * H] * jnp.tanh(c_new)                      # o*tanh(c)
    return h_new, c_new


def _attend(out3, att_w, att_b):
    """pre4att(tanh(out)) -> softmax(dim=1) -> bmm -> relu.  out3: (S, Bt, H)."""
    score = jnp.sum(jnp.tanh(out3) * att_w[None, :, :], axis=-1,
                    keepdims=True) + att_b                             # (S, Bt, 1)
    m = jnp.max(score, axis=1, keepdims=True)
    e = jnp.exp(score - m)
    alpha = e / jnp.sum(e, axis=1, keepdims=True)
    new_h = jnp.sum(out3 * alpha, axis=1)                              # (S, H)
    return jnp.maximum(new_h, 0.0)


# ---------------------------------------------------------------------------
# The single fused forward kernel
# ---------------------------------------------------------------------------

def _fused_forward_kernel(x_ref, sel_ego_ref, sel_nbr_ref, emb_w_ref, emb_b_ref,
                          wih_ref, b_ref, ego_whh_ref, nbr_whh_ref,
                          att_w_ref, att_b_ref, dec_wih_ref, dec_whh_ref, dec_b_ref,
                          out_w_ref, out_b_ref, o_ref,
                          *, B, N, T, H, D, L, Lp, P, use_neighbor):
    BT = B * T
    x = x_ref[...]                                   # (B*T [+ N*T], 7)

    # Shared embedding + LeakyReLU(0.1) over ALL rows of both branches (one MXU pass).
    emb = jnp.dot(x, emb_w_ref[...], preferred_element_type=jnp.float32) + emb_b_ref[...]
    emb = jnp.where(emb > 0, emb, 0.1 * emb)

    # Hoisted input->hidden matmul for all steps of both branches at once against the
    # column-concatenated [ego_wih | nbr_wih]; sliced per branch below.
    gates_all = jnp.dot(emb, wih_ref[...], preferred_element_type=jnp.float32) + b_ref[...]

    att_w = att_w_ref[...]                           # (1, H)
    att_b = att_b_ref[...]                           # (1, 1)

    # --- two independent serial LSTM recurrences, interleaved per step ------------
    whh_e = ego_whh_ref[...]
    h_e = jnp.zeros((T, H), jnp.float32)
    c_e = jnp.zeros((T, H), jnp.float32)
    hs_e = []
    if use_neighbor:
        gates_n = gates_all[BT:, 4 * H:8 * H]        # (N*T, 4H)
        whh_n = nbr_whh_ref[...]
        h_n = jnp.zeros((T, H), jnp.float32)
        c_n = jnp.zeros((T, H), jnp.float32)
        hs_n = []
        n_steps = max(B, N)
    else:
        n_steps = B

    for s in range(n_steps):                         # fully unrolled (B, N are tiny)
        if s < B:
            h_e, c_e = _lstm_step(gates_all[s * T:(s + 1) * T, 0:4 * H],
                                  h_e, c_e, whh_e, H)
            hs_e.append(h_e)
        if use_neighbor and s < N:
            h_n, c_n = _lstm_step(gates_n[s * T:(s + 1) * T, :],
                                  h_n, c_n, whh_n, H)
            hs_n.append(h_n)

    # Per-branch attention over the full hidden sequences.
    ego_hidden = _attend(jnp.stack(hs_e, axis=0), att_w, att_b)        # (B, H)

    # masked_scatter_ + permute(0,3,2,1) + view + cat, as slot-level one-hot matmuls.
    combine = jnp.dot(sel_ego_ref[...], ego_hidden,
                      preferred_element_type=jnp.float32)              # (B*Lp, H)
    if use_neighbor:
        nbr_hidden = _attend(jnp.stack(hs_n, axis=0), att_w, att_b)    # (N, H)
        combine = combine + jnp.dot(sel_nbr_ref[...], nbr_hidden,
                                    preferred_element_type=jnp.float32)
    combine = combine.reshape(B, Lp, H)              # Lp is a multiple of 8 (aligned)

    # Combine attention (padded slots l >= L are masked out of the softmax; their
    # rows are zero so they do not contribute to the weighted sum either).
    score = jnp.sum(jnp.tanh(combine) * att_w[None, :, :], axis=-1,
                    keepdims=True) + att_b                             # (B, Lp, 1)
    l_idx = jax.lax.broadcasted_iota(jnp.int32, (B, Lp, 1), 1)
    score = jnp.where(l_idx < L, score, -1e30)
    m = jnp.max(score, axis=1, keepdims=True)
    e = jnp.exp(score - m)
    alpha = e / jnp.sum(e, axis=1, keepdims=True)
    all_encode = jnp.maximum(jnp.sum(combine * alpha, axis=1), 0.0)    # (B, H)

    # --- decoder: input identical every step -> input matmul computed once --------
    gx_d = jnp.dot(all_encode, dec_wih_ref[...],
                   preferred_element_type=jnp.float32) + dec_b_ref[...]  # (B, 4D)
    whh_d = dec_whh_ref[...]
    h = jnp.zeros((B, D), jnp.float32)
    c = jnp.zeros((B, D), jnp.float32)
    hs_d = []
    for _ in range(P):                               # fully unrolled
        h, c = _lstm_step(gx_d, h, c, whh_d, D)
        hs_d.append(h)
    hdec = jnp.concatenate(hs_d, axis=0)             # (P*B, D), rows (step, batch)

    # Output Linear hoisted out of the recurrence: ONE matmul + ONE store.
    fut = jnp.dot(hdec, out_w_ref[...], preferred_element_type=jnp.float32) + out_b_ref[...]
    o_ref[...] = fut.astype(o_ref.dtype)             # (P*B, 2)


# ---------------------------------------------------------------------------
# Wrapper: builds the tiny one-hot slot-selection matrices and calls the kernel.
# ---------------------------------------------------------------------------

def trajectory_network_forward(params, history_states, neighbors_his_states, mask,
                               *, predict_step, enable_neighbor=True):
    B, T, _ = history_states.shape
    H = params["ego_whh"].shape[0]
    D = params["dec_whh"].shape[0]
    P = predict_step

    hist2d = history_states.reshape(B * T, 7)

    if enable_neighbor:
        N = neighbors_his_states.shape[0]
        _, G1, G2, _ = mask.shape
        L = 1 + G2 * G1
        Lp = ((L + 7) // 8) * 8                      # pad slot axis to a sublane tile

        all_x = jnp.concatenate(
            [hist2d, neighbors_his_states.reshape(N * T, 7)], axis=0)
        wih = jnp.concatenate([params["ego_wih"], params["nbr_wih"]], axis=1)
        b_gate = jnp.concatenate([params["ego_b"], params["nbr_b"]], axis=1)

        # masked_scatter_ emulation (slot-level): slot k in row-major (b,g1,g2) order
        # receives neighbor row rank(k); un-marked slots stay zero.  Slots beyond the
        # number of neighbors are dropped (zero) rather than duplicated.
        slot_mask = (mask[..., 0] > 0).reshape(-1)                       # (B*G1*G2,)
        rank = jnp.cumsum(slot_mask.astype(jnp.int32)) - 1
        onehot = ((rank[:, None] == jnp.arange(N)[None, :]) &
                  slot_mask[:, None]).astype(jnp.float32)                # (B*G1*G2, N)
        # permute(0,3,2,1) + view(B,E,G2*G1) + final permute(0,2,1) => slot l-1 = g2*G1+g1
        onehot = onehot.reshape(B, G1, G2, N).transpose(0, 2, 1, 3).reshape(B, G2 * G1, N)
        sel_nbr = jnp.zeros((B, Lp, N), jnp.float32).at[:, 1:L, :].set(onehot)
        sel_nbr = sel_nbr.reshape(B * Lp, N)
    else:
        N = 1
        L = 1
        Lp = 8
        all_x = hist2d
        wih = params["ego_wih"]
        b_gate = params["ego_b"]
        sel_nbr = jnp.zeros((1, 1), jnp.float32)     # unused dummy ref

    # Slot 0 of every batch row is the ego encoding.
    sel_ego = jnp.zeros((B, Lp, B), jnp.float32).at[:, 0, :].set(
        jnp.eye(B, dtype=jnp.float32)).reshape(B * Lp, B)

    kernel = functools.partial(_fused_forward_kernel, B=B, N=N, T=T, H=H, D=D,
                               L=L, Lp=Lp, P=P, use_neighbor=enable_neighbor)
    fut2d = pl.pallas_call(
        kernel,
        out_shape=jax.ShapeDtypeStruct((P * B, 2), jnp.float32),
    )(all_x, sel_ego, sel_nbr,
      params["emb_w"], params["emb_b"], wih, b_gate,
      params["ego_whh"], params["nbr_whh"],
      params["att_w"], params["att_b"],
      params["dec_wih"], params["dec_whh"], params["dec_b"],
      params["out_w"], params["out_b"])

    # rows of fut2d are (step, batch)-major -> (B, P, 2); outputActivation is identity.
    return jnp.transpose(fut2d.reshape(P, B, 2), (1, 0, 2))


# ---------------------------------------------------------------------------
# Deterministic parameter init (shapes from TrajectoryNetwork.__init__)
# ---------------------------------------------------------------------------

def init_params(key, emb, encode, decode):
    ks = jax.random.split(key, 15)

    def u(k, shape, fan):
        bound = 1.0 / (fan ** 0.5)
        return jax.random.uniform(k, shape, jnp.float32, -bound, bound)

    return {
        "emb_w": u(ks[0], (7, emb), 7),
        "emb_b": u(ks[1], (1, emb), 7),
        "ego_wih": u(ks[2], (emb, 4 * encode), encode),
        "ego_whh": u(ks[3], (encode, 4 * encode), encode),
        "ego_b": u(ks[4], (1, 4 * encode), encode),      # == b_ih + b_hh of nn.LSTM
        "nbr_wih": u(ks[5], (emb, 4 * encode), encode),
        "nbr_whh": u(ks[6], (encode, 4 * encode), encode),
        "nbr_b": u(ks[7], (1, 4 * encode), encode),
        "dec_wih": u(ks[8], (encode, 4 * decode), decode),
        "dec_whh": u(ks[9], (decode, 4 * decode), decode),
        "dec_b": u(ks[10], (1, 4 * decode), decode),
        "out_w": u(ks[11], (decode, 2), decode),
        "out_b": u(ks[12], (1, 2), decode),
        "att_w": u(ks[13], (1, encode), encode),         # pre4att Linear(encode, 1)
        "att_b": u(ks[14], (1, 1), encode),
    }


if __name__ == "__main__":
    key = jax.random.PRNGKey(0)
    kp, kh, kn = jax.random.split(key, 3)

    # small shapes consistent with the module
    B, T, N_NBR, G1, G2 = 2, 8, 3, 3, 2
    EMB, ENC, DEC, PREDICT = 16, 32, 32, 5

    params = init_params(kp, EMB, ENC, DEC)
    history_states = jax.random.normal(kh, (B, T, 7), jnp.float32)
    neighbors_his_states = jax.random.normal(kn, (N_NBR, T, 7), jnp.float32)

    # mask: (B, G1, G2, ENC); exactly N_NBR full encode-slots set (masked_scatter target)
    mask = jnp.zeros((B, G1, G2, ENC), jnp.float32)
    mask = mask.at[0, 0, 1, :].set(1.0)
    mask = mask.at[0, 2, 0, :].set(1.0)
    mask = mask.at[1, 1, 1, :].set(1.0)

    fwd = jax.jit(functools.partial(trajectory_network_forward, predict_step=PREDICT))
    out = fwd(params, history_states, neighbors_his_states, mask)
    out = jax.block_until_ready(out)
    assert out.shape == (B, PREDICT, 2), out.shape
    assert bool(jnp.all(jnp.isfinite(out)))
    print("KERNEL_OK")
</pallas_src>

<mosaic_0001>
module attributes {stable_mosaic.version = 11 : i64} {
  func.func @_fused_forward_kernel(%arg0: memref<40x7xf32, #tpu.memory_space<vmem>>, %arg1: memref<16x2xf32, #tpu.memory_space<vmem>>, %arg2: memref<16x3xf32, #tpu.memory_space<vmem>>, %arg3: memref<7x16xf32, #tpu.memory_space<vmem>>, %arg4: memref<1x16xf32, #tpu.memory_space<vmem>>, %arg5: memref<16x256xf32, #tpu.memory_space<vmem>>, %arg6: memref<1x256xf32, #tpu.memory_space<vmem>>, %arg7: memref<32x128xf32, #tpu.memory_space<vmem>>, %arg8: memref<32x128xf32, #tpu.memory_space<vmem>>, %arg9: memref<1x32xf32, #tpu.memory_space<vmem>>, %arg10: memref<1x1xf32, #tpu.memory_space<vmem>>, %arg11: memref<32x128xf32, #tpu.memory_space<vmem>>, %arg12: memref<32x128xf32, #tpu.memory_space<vmem>>, %arg13: memref<1x128xf32, #tpu.memory_space<vmem>>, %arg14: memref<32x2xf32, #tpu.memory_space<vmem>>, %arg15: memref<1x2xf32, #tpu.memory_space<vmem>>, %arg16: memref<10x2xf32, #tpu.memory_space<vmem>>) attributes {dimension_semantics = [], scalar_prefetch = 0 : i64, scratch_operands = 0 : i64, tpu.core_type = #tpu.core_type<tc>} {
    %c0 = arith.constant 0 : index
    %c0_0 = arith.constant 0 : index
    %0 = vector.load %arg0[%c0, %c0_0] : memref<40x7xf32, #tpu.memory_space<vmem>>, vector<40x7xf32>
    %c0_1 = arith.constant 0 : index
    %c0_2 = arith.constant 0 : index
    %1 = vector.load %arg3[%c0_1, %c0_2] : memref<7x16xf32, #tpu.memory_space<vmem>>, vector<7x16xf32>
    %cst = arith.constant dense<0.000000e+00> : vector<40x16xf32>
    %2 = tpu.matmul %0, %1, %cst {dimension_numbers = #tpu.dot_dimension_numbers<[1], [0], [0], [1], [0, 0, 1, 1], [], []>} : vector<40x7xf32>, vector<7x16xf32>, vector<40x16xf32> -> vector<40x16xf32>
    %c0_3 = arith.constant 0 : index
    %c0_4 = arith.constant 0 : index
    %3 = vector.load %arg4[%c0_3, %c0_4] : memref<1x16xf32, #tpu.memory_space<vmem>>, vector<1x16xf32>
    %4 = vector.broadcast %3 : vector<1x16xf32> to vector<40x16xf32>
    %5 = arith.addf %2, %4 : vector<40x16xf32>
    %cst_5 = arith.constant 0.000000e+00 : f32
    %6 = vector.broadcast %cst_5 : f32 to vector<40x16xf32>
    %7 = arith.cmpf ogt, %5, %6 : vector<40x16xf32>
    %cst_6 = arith.constant 1.000000e-01 : f32
    %8 = vector.broadcast %cst_6 : f32 to vector<40x16xf32>
    %9 = arith.mulf %8, %5 : vector<40x16xf32>
    %10 = arith.select %7, %5, %9 : vector<40x16xi1>, vector<40x16xf32>
    %c0_7 = arith.constant 0 : index
    %c0_8 = arith.constant 0 : index
    %11 = vector.load %arg5[%c0_7, %c0_8] : memref<16x256xf32, #tpu.memory_space<vmem>>, vector<16x256xf32>
    %cst_9 = arith.constant dense<0.000000e+00> : vector<40x256xf32>
    %12 = tpu.matmul %10, %11, %cst_9 {dimension_numbers = #tpu.dot_dimension_numbers<[1], [0], [0], [1], [0, 0, 1, 1], [], []>} : vector<40x16xf32>, vector<16x256xf32>, vector<40x256xf32> -> vector<40x256xf32>
    %c0_10 = arith.constant 0 : index
    %c0_11 = arith.constant 0 : index
    %13 = vector.load %arg6[%c0_10, %c0_11] : memref<1x256xf32, #tpu.memory_space<vmem>>, vector<1x256xf32>
    %14 = vector.broadcast %13 : vector<1x256xf32> to vector<40x256xf32>
    %15 = arith.addf %12, %14 : vector<40x256xf32>
    %c0_12 = arith.constant 0 : index
    %c0_13 = arith.constant 0 : index
    %16 = vector.load %arg9[%c0_12, %c0_13] : memref<1x32xf32, #tpu.memory_space<vmem>>, vector<1x32xf32>
    %c0_14 = arith.constant 0 : index
    %c0_15 = arith.constant 0 : index
    %17 = vector.load %arg10[%c0_14, %c0_15] : memref<1x1xf32, #tpu.memory_space<vmem>>, vector<1x1xf32>
    %c0_16 = arith.constant 0 : index
    %c0_17 = arith.constant 0 : index
    %18 = vector.load %arg7[%c0_16, %c0_17] : memref<32x128xf32, #tpu.memory_space<vmem>>, vector<32x128xf32>
    %cst_18 = arith.constant 0.000000e+00 : f32
    %19 = vector.broadcast %cst_18 : f32 to vector<8x32xf32>
    %cst_19 = arith.constant 0.000000e+00 : f32
    %20 = vector.broadcast %cst_19 : f32 to vector<8x32xf32>
    %21 = vector.extract_strided_slice %15 {offsets = [16, 128], sizes = [24, 128], strides = [1, 1]} : vector<40x256xf32> to vector<24x128xf32>
    %c0_20 = arith.constant 0 : index
    %c0_21 = arith.constant 0 : index
    %22 = vector.load %arg8[%c0_20, %c0_21] : memref<32x128xf32, #tpu.memory_space<vmem>>, vector<32x128xf32>
    %cst_22 = arith.constant 0.000000e+00 : f32
    %23 = vector.broadcast %cst_22 : f32 to vector<8x32xf32>
    %cst_23 = arith.constant 0.000000e+00 : f32
    %24 = vector.broadcast %cst_23 : f32 to vector<8x32xf32>
    %25 = vector.extract_strided_slice %15 {offsets = [0, 0], sizes = [8, 128], strides = [1, 1]} : vector<40x256xf32> to vector<8x128xf32>
    %cst_24 = arith.constant dense<0.000000e+00> : vector<8x128xf32>
    %26 = tpu.matmul %19, %18, %cst_24 {dimension_numbers = #tpu.dot_dimension_numbers<[1], [0], [0], [1], [0, 0, 1, 1], [], []>} : vector<8x32xf32>, vector<32x128xf32>, vector<8x128xf32> -> vector<8x128xf32>
    %27 = arith.addf %25, %26 : vector<8x128xf32>
    %28 = arith.negf %27 : vector<8x128xf32>
    %29 = math.exp %28 : vector<8x128xf32>
    %cst_25 = arith.constant 1.000000e+00 : f32
    %30 = vector.broadcast %cst_25 : f32 to vector<8x128xf32>
    %31 = arith.addf %30, %29 : vector<8x128xf32>
    %32 = arith.divf %30, %31 : vector<8x128xf32>
    %33 = math.tanh %27 : vector<8x128xf32>
    %34 = vector.extract_strided_slice %32 {offsets = [0, 32], sizes = [8, 32], strides = [1, 1]} : vector<8x128xf32> to vector<8x32xf32>
    %35 = arith.mulf %34, %20 : vector<8x32xf32>
    %36 = vector.extract_strided_slice %32 {offsets = [0, 0], sizes = [8, 32], strides = [1, 1]} : vector<8x128xf32> to vector<8x32xf32>
    %37 = vector.extract_strided_slice %33 {offsets = [0, 64], sizes = [8, 32], strides = [1, 1]} : vector<8x128xf32> to vector<8x32xf32>
    %38 = arith.mulf %36, %37 : vector<8x32xf32>
    %39 = arith.addf %35, %38 : vector<8x32xf32>
    %40 = vector.extract_strided_slice %32 {offsets = [0, 96], sizes = [8, 32], strides = [1, 1]} : vector<8x128xf32> to vector<8x32xf32>
    %41 = math.tanh %39 : vector<8x32xf32>
    %42 = arith.mulf %40, %41 : vector<8x32xf32>
    %43 = vector.extract_strided_slice %21 {offsets = [0, 0], sizes = [8, 128], strides = [1, 1]} : vector<24x128xf32> to vector<8x128xf32>
    %cst_26 = arith.constant dense<0.000000e+00> : vector<8x128xf32>
    %44 = tpu.matmul %23, %22, %cst_26 {dimension_numbers = #tpu.dot_dimension_numbers<[1], [0], [0], [1], [0, 0, 1, 1], [], []>} : vector<8x32xf32>, vector<32x128xf32>, vector<8x128xf32> -> vector<8x128xf32>
    %45 = arith.addf %43, %44 : vector<8x128xf32>
    %46 = arith.negf %45 : vector<8x128xf32>
    %47 = math.exp %46 : vector<8x128xf32>
    %cst_27 = arith.constant 1.000000e+00 : f32
    %48 = vector.broadcast %cst_27 : f32 to vector<8x128xf32>
    %49 = arith.addf %48, %47 : vector<8x128xf32>
    %50 = arith.divf %48, %49 : vector<8x128xf32>
    %51 = math.tanh %45 : vector<8x128xf32>
    %52 = vector.extract_strided_slice %50 {offsets = [0, 32], sizes = [8, 32], strides = [1, 1]} : vector<8x128xf32> to vector<8x32xf32>
    %53 = arith.mulf %52, %24 : vector<8x32xf32>
    %54 = vector.extract_strided_slice %50 {offsets = [0, 0], sizes = [8, 32], strides = [1, 1]} : vector<8x128xf32> to vector<8x32xf32>
    %55 = vector.extract_strided_slice %51 {offsets = [0, 64], sizes = [8, 32], strides = [1, 1]} : vector<8x128xf32> to vector<8x32xf32>
    %56 = arith.mulf %54, %55 : vector<8x32xf32>
    %57 = arith.addf %53, %56 : vector<8x32xf32>
    %58 = vector.extract_strided_slice %50 {offsets = [0, 96], sizes = [8, 32], strides = [1, 1]} : vector<8x128xf32> to vector<8x32xf32>
    %59 = math.tanh %57 : vector<8x32xf32>
    %60 = arith.mulf %58, %59 : vector<8x32xf32>
    %61 = vector.extract_strided_slice %15 {offsets = [8, 0], sizes = [8, 128], strides = [1, 1]} : vector<40x256xf32> to vector<8x128xf32>
    %cst_28 = arith.constant dense<0.000000e+00> : vector<8x128xf32>
    %62 = tpu.matmul %42, %18, %cst_28 {dimension_numbers = #tpu.dot_dimension_numbers<[1], [0], [0], [1], [0, 0, 1, 1], [], []>} : vector<8x32xf32>, vector<32x128xf32>, vector<8x128xf32> -> vector<8x128xf32>
    %63 = arith.addf %61, %62 : vector<8x128xf32>
    %64 = arith.negf %63 : vector<8x128xf32>
    %65 = math.exp %64 : vector<8x128xf32>
    %cst_29 = arith.constant 1.000000e+00 : f32
    %66 = vector.broadcast %cst_29 : f32 to vector<8x128xf32>
    %67 = arith.addf %66, %65 : vector<8x128xf32>
    %68 = arith.divf %66, %67 : vector<8x128xf32>
    %69 = math.tanh %63 : vector<8x128xf32>
    %70 = vector.extract_strided_slice %68 {offsets = [0, 32], sizes = [8, 32], strides = [1, 1]} : vector<8x128xf32> to vector<8x32xf32>
    %71 = arith.mulf %70, %39 : vector<8x32xf32>
    %72 = vector.extract_strided_slice %68 {offsets = [0, 0], sizes = [8, 32], strides = [1, 1]} : vector<8x128xf32> to vector<8x32xf32>
    %73 = vector.extract_strided_slice %69 {offsets = [0, 64], sizes = [8, 32], strides = [1, 1]} : vector<8x128xf32> to vector<8x32xf32>
    %74 = arith.mulf %72, %73 : vector<8x32xf32>
    %75 = arith.addf %71, %74 : vector<8x32xf32>
    %76 = vector.extract_strided_slice %68 {offsets = [0, 96], sizes = [8, 32], strides = [1, 1]} : vector<8x128xf32> to vector<8x32xf32>
    %77 = math.tanh %75 : vector<8x32xf32>
    %78 = arith.mulf %76, %77 : vector<8x32xf32>
    %79 = vector.extract_strided_slice %21 {offsets = [8, 0], sizes = [8, 128], strides = [1, 1]} : vector<24x128xf32> to vector<8x128xf32>
    %cst_30 = arith.constant dense<0.000000e+00> : vector<8x128xf32>
    %80 = tpu.matmul %60, %22, %cst_30 {dimension_numbers = #tpu.dot_dimension_numbers<[1], [0], [0], [1], [0, 0, 1, 1], [], []>} : vector<8x32xf32>, vector<32x128xf32>, vector<8x128xf32> -> vector<8x128xf32>
    %81 = arith.addf %79, %80 : vector<8x128xf32>
    %82 = arith.negf %81 : vector<8x128xf32>
    %83 = math.exp %82 : vector<8x128xf32>
    %cst_31 = arith.constant 1.000000e+00 : f32
    %84 = vector.broadcast %cst_31 : f32 to vector<8x128xf32>
    %85 = arith.addf %84, %83 : vector<8x128xf32>
    %86 = arith.divf %84, %85 : vector<8x128xf32>
    %87 = math.tanh %81 : vector<8x128xf32>
    %88 = vector.extract_strided_slice %86 {offsets = [0, 32], sizes = [8, 32], strides = [1, 1]} : vector<8x128xf32> to vector<8x32xf32>
    %89 = arith.mulf %88, %57 : vector<8x32xf32>
    %90 = vector.extract_strided_slice %86 {offsets = [0, 0], sizes = [8, 32], strides = [1, 1]} : vector<8x128xf32> to vector<8x32xf32>
    %91 = vector.extract_strided_slice %87 {offsets = [0, 64], sizes = [8, 32], strides = [1, 1]} : vector<8x128xf32> to vector<8x32xf32>
    %92 = arith.mulf %90, %91 : vector<8x32xf32>
    %93 = arith.addf %89, %92 : vector<8x32xf32>
    %94 = vector.extract_strided_slice %86 {offsets = [0, 96], sizes = [8, 32], strides = [1, 1]} : vector<8x128xf32> to vector<8x32xf32>
    %95 = math.tanh %93 : vector<8x32xf32>
    %96 = arith.mulf %94, %95 : vector<8x32xf32>
    %97 = vector.extract_strided_slice %21 {offsets = [16, 0], sizes = [8, 128], strides = [1, 1]} : vector<24x128xf32> to vector<8x128xf32>
    %cst_32 = arith.constant dense<0.000000e+00> : vector<8x128xf32>
    %98 = tpu.matmul %96, %22, %cst_32 {dimension_numbers = #tpu.dot_dimension_numbers<[1], [0], [0], [1], [0, 0, 1, 1], [], []>} : vector<8x32xf32>, vector<32x128xf32>, vector<8x128xf32> -> vector<8x128xf32>
    %99 = arith.addf %97, %98 : vector<8x128xf32>
    %100 = arith.negf %99 : vector<8x128xf32>
    %101 = math.exp %100 : vector<8x128xf32>
    %cst_33 = arith.constant 1.000000e+00 : f32
    %102 = vector.broadcast %cst_33 : f32 to vector<8x128xf32>
    %103 = arith.addf %102, %101 : vector<8x128xf32>
    %104 = arith.divf %102, %103 : vector<8x128xf32>
    %105 = math.tanh %99 : vector<8x128xf32>
    %106 = vector.extract_strided_slice %104 {offsets = [0, 32], sizes = [8, 32], strides = [1, 1]} : vector<8x128xf32> to vector<8x32xf32>
    %107 = arith.mulf %106, %93 : vector<8x32xf32>
    %108 = vector.extract_strided_slice %104 {offsets = [0, 0], sizes = [8, 32], strides = [1, 1]} : vector<8x128xf32> to vector<8x32xf32>
    %109 = vector.extract_strided_slice %105 {offsets = [0, 64], sizes = [8, 32], strides = [1, 1]} : vector<8x128xf32> to vector<8x32xf32>
    %110 = arith.mulf %108, %109 : vector<8x32xf32>
    %111 = arith.addf %107, %110 : vector<8x32xf32>
    %112 = vector.extract_strided_slice %104 {offsets = [0, 96], sizes = [8, 32], strides = [1, 1]} : vector<8x128xf32> to vector<8x32xf32>
    %113 = math.tanh %111 : vector<8x32xf32>
    %114 = arith.mulf %112, %113 : vector<8x32xf32>
    %115 = vector.shape_cast %42 : vector<8x32xf32> to vector<1x8x32xf32>
    %116 = vector.shape_cast %78 : vector<8x32xf32> to vector<1x8x32xf32>
    %117 = tpu.concatenate %115, %116 in 0 : vector<1x8x32xf32>, vector<1x8x32xf32> -> vector<2x8x32xf32>
    %118 = math.tanh %117 : vector<2x8x32xf32>
    %119 = vector.shape_cast %16 : vector<1x32xf32> to vector<1x1x32xf32>
    %120 = vector.broadcast %119 : vector<1x1x32xf32> to vector<2x8x32xf32>
    %121 = arith.mulf %118, %120 : vector<2x8x32xf32>
    %cst_34 = arith.constant dense<0.000000e+00> : vector<2x8xf32>
    %122 = vector.multi_reduction <add>, %121, %cst_34 [2] : vector<2x8x32xf32> to vector<2x8xf32>
    %123 = vector.shape_cast %122 : vector<2x8xf32> to vector<2x8x1xf32>
    %124 = vector.shape_cast %17 : vector<1x1xf32> to vector<1x1x1xf32>
    %125 = vector.broadcast %124 : vector<1x1x1xf32> to vector<2x8x1xf32>
    %126 = arith.addf %123, %125 : vector<2x8x1xf32>
    %cst_35 = arith.constant dense<0xFF800000> : vector<2x1xf32>
    %127 = vector.multi_reduction <maximumf>, %126, %cst_35 [1] : vector<2x8x1xf32> to vector<2x1xf32>
    %128 = vector.shape_cast %127 : vector<2x1xf32> to vector<2x1x1xf32>
    %129 = vector.broadcast %128 : vector<2x1x1xf32> to vector<2x8x1xf32>
    %130 = arith.subf %126, %129 : vector<2x8x1xf32>
    %131 = math.exp %130 : vector<2x8x1xf32>
    %cst_36 = arith.constant dense<0.000000e+00> : vector<2x1xf32>
    %132 = vector.multi_reduction <add>, %131, %cst_36 [1] : vector<2x8x1xf32> to vector<2x1xf32>
    %133 = vector.shape_cast %132 : vector<2x1xf32> to vector<2x1x1xf32>
    %134 = vector.broadcast %133 : vector<2x1x1xf32> to vector<2x8x1xf32>
    %135 = arith.divf %131, %134 : vector<2x8x1xf32>
    %136 = vector.broadcast %135 : vector<2x8x1xf32> to vector<2x8x32xf32>
    %137 = arith.mulf %117, %136 : vector<2x8x32xf32>
    %cst_37 = arith.constant dense<0.000000e+00> : vector<2x32xf32>
    %138 = vector.multi_reduction <add>, %137, %cst_37 [1] : vector<2x8x32xf32> to vector<2x32xf32>
    %cst_38 = arith.constant 0.000000e+00 : f32
    %139 = vector.broadcast %cst_38 : f32 to vector<2x32xf32>
    %140 = arith.maximumf %138, %139 : vector<2x32xf32>
    %c0_39 = arith.constant 0 : index
    %c0_40 = arith.constant 0 : index
    %141 = vector.load %arg1[%c0_39, %c0_40] : memref<16x2xf32, #tpu.memory_space<vmem>>, vector<16x2xf32>
    %cst_41 = arith.constant dense<0.000000e+00> : vector<16x32xf32>
    %142 = tpu.matmul %141, %140, %cst_41 {dimension_numbers = #tpu.dot_dimension_numbers<[1], [0], [0], [1], [0, 0, 1, 1], [], []>} : vector<16x2xf32>, vector<2x32xf32>, vector<16x32xf32> -> vector<16x32xf32>
    %143 = vector.shape_cast %60 : vector<8x32xf32> to vector<1x8x32xf32>
    %144 = vector.shape_cast %96 : vector<8x32xf32> to vector<1x8x32xf32>
    %145 = vector.shape_cast %114 : vector<8x32xf32> to vector<1x8x32xf32>
    %146 = tpu.concatenate %143, %144, %145 in 0 : vector<1x8x32xf32>, vector<1x8x32xf32>, vector<1x8x32xf32> -> vector<3x8x32xf32>
    %147 = math.tanh %146 : vector<3x8x32xf32>
    %148 = vector.shape_cast %16 : vector<1x32xf32> to vector<1x1x32xf32>
    %149 = vector.broadcast %148 : vector<1x1x32xf32> to vector<3x8x32xf32>
    %150 = arith.mulf %147, %149 : vector<3x8x32xf32>
    %cst_42 = arith.constant dense<0.000000e+00> : vector<3x8xf32>
    %151 = vector.multi_reduction <add>, %150, %cst_42 [2] : vector<3x8x32xf32> to vector<3x8xf32>
    %152 = vector.shape_cast %151 : vector<3x8xf32> to vector<3x8x1xf32>
    %153 = vector.shape_cast %17 : vector<1x1xf32> to vector<1x1x1xf32>
    %154 = vector.broadcast %153 : vector<1x1x1xf32> to vector<3x8x1xf32>
    %155 = arith.addf %152, %154 : vector<3x8x1xf32>
    %cst_43 = arith.constant dense<0xFF800000> : vector<3x1xf32>
    %156 = vector.multi_reduction <maximumf>, %155, %cst_43 [1] : vector<3x8x1xf32> to vector<3x1xf32>
    %157 = vector.shape_cast %156 : vector<3x1xf32> to vector<3x1x1xf32>
    %158 = vector.broadcast %157 : vector<3x1x1xf32> to vector<3x8x1xf32>
    %159 = arith.subf %155, %158 : vector<3x8x1xf32>
    %160 = math.exp %159 : vector<3x8x1xf32>
    %cst_44 = arith.constant dense<0.000000e+00> : vector<3x1xf32>
    %161 = vector.multi_reduction <add>, %160, %cst_44 [1] : vector<3x8x1xf32> to vector<3x1xf32>
    %162 = vector.shape_cast %161 : vector<3x1xf32> to vector<3x1x1xf32>
    %163 = vector.broadcast %162 : vector<3x1x1xf32> to vector<3x8x1xf32>
    %164 = arith.divf %160, %163 : vector<3x8x1xf32>
    %165 = vector.broadcast %164 : vector<3x8x1xf32> to vector<3x8x32xf32>
    %166 = arith.mulf %146, %165 : vector<3x8x32xf32>
    %cst_45 = arith.constant dense<0.000000e+00> : vector<3x32xf32>
    %167 = vector.multi_reduction <add>, %166, %cst_45 [1] : vector<3x8x32xf32> to vector<3x32xf32>
    %cst_46 = arith.constant 0.000000e+00 : f32
    %168 = vector.broadcast %cst_46 : f32 to vector<3x32xf32>
    %169 = arith.maximumf %167, %168 : vector<3x32xf32>
    %c0_47 = arith.constant 0 : index
    %c0_48 = arith.constant 0 : index
    %170 = vector.load %arg2[%c0_47, %c0_48] : memref<16x3xf32, #tpu.memory_space<vmem>>, vector<16x3xf32>
    %cst_49 = arith.constant dense<0.000000e+00> : vector<16x32xf32>
    %171 = tpu.matmul %170, %169, %cst_49 {dimension_numbers = #tpu.dot_dimension_numbers<[1], [0], [0], [1], [0, 0, 1, 1], [], []>} : vector<16x3xf32>, vector<3x32xf32>, vector<16x32xf32> -> vector<16x32xf32>
    %172 = arith.addf %142, %171 : vector<16x32xf32>
    %173 = vector.shape_cast %172 : vector<16x32xf32> to vector<2x8x32xf32>
    %174 = math.tanh %173 : vector<2x8x32xf32>
    %175 = vector.shape_cast %16 : vector<1x32xf32> to vector<1x1x32xf32>
    %176 = vector.broadcast %175 : vector<1x1x32xf32> to vector<2x8x32xf32>
    %177 = arith.mulf %174, %176 : vector<2x8x32xf32>
    %cst_50 = arith.constant dense<0.000000e+00> : vector<2x8xf32>
    %178 = vector.multi_reduction <add>, %177, %cst_50 [2] : vector<2x8x32xf32> to vector<2x8xf32>
    %179 = vector.shape_cast %178 : vector<2x8xf32> to vector<2x8x1xf32>
    %180 = vector.shape_cast %17 : vector<1x1xf32> to vector<1x1x1xf32>
    %181 = vector.broadcast %180 : vector<1x1x1xf32> to vector<2x8x1xf32>
    %182 = arith.addf %179, %181 : vector<2x8x1xf32>
    %183 = tpu.iota {dimensions = array<i32: 1>} : vector<2x8x1xi32>
    %c7_i32 = arith.constant 7 : i32
    %184 = vector.broadcast %c7_i32 : i32 to vector<2x8x1xi32>
    %185 = arith.cmpi slt, %183, %184 : vector<2x8x1xi32>
    %cst_51 = arith.constant -1.000000e+30 : f32
    %186 = vector.broadcast %cst_51 : f32 to vector<2x8x1xf32>
    %187 = arith.select %185, %182, %186 : vector<2x8x1xi1>, vector<2x8x1xf32>
    %cst_52 = arith.constant dense<0xFF800000> : vector<2x1xf32>
    %188 = vector.multi_reduction <maximumf>, %187, %cst_52 [1] : vector<2x8x1xf32> to vector<2x1xf32>
    %189 = vector.shape_cast %188 : vector<2x1xf32> to vector<2x1x1xf32>
    %190 = vector.broadcast %189 : vector<2x1x1xf32> to vector<2x8x1xf32>
    %191 = arith.subf %187, %190 : vector<2x8x1xf32>
    %192 = math.exp %191 : vector<2x8x1xf32>
    %cst_53 = arith.constant dense<0.000000e+00> : vector<2x1xf32>
    %193 = vector.multi_reduction <add>, %192, %cst_53 [1] : vector<2x8x1xf32> to vector<2x1xf32>
    %194 = vector.shape_cast %193 : vector<2x1xf32> to vector<2x1x1xf32>
    %195 = vector.broadcast %194 : vector<2x1x1xf32> to vector<2x8x1xf32>
    %196 = arith.divf %192, %195 : vector<2x8x1xf32>
    %197 = vector.broadcast %196 : vector<2x8x1xf32> to vector<2x8x32xf32>
    %198 = arith.mulf %173, %197 : vector<2x8x32xf32>
    %cst_54 = arith.constant dense<0.000000e+00> : vector<2x32xf32>
    %199 = vector.multi_reduction <add>, %198, %cst_54 [1] : vector<2x8x32xf32> to vector<2x32xf32>
    %cst_55 = arith.constant 0.000000e+00 : f32
    %200 = vector.broadcast %cst_55 : f32 to vector<2x32xf32>
    %201 = arith.maximumf %199, %200 : vector<2x32xf32>
    %c0_56 = arith.constant 0 : index
    %c0_57 = arith.constant 0 : index
    %202 = vector.load %arg11[%c0_56, %c0_57] : memref<32x128xf32, #tpu.memory_space<vmem>>, vector<32x128xf32>
    %cst_58 = arith.constant dense<0.000000e+00> : vector<2x128xf32>
    %203 = tpu.matmul %201, %202, %cst_58 {dimension_numbers = #tpu.dot_dimension_numbers<[1], [0], [0], [1], [0, 0, 1, 1], [], []>} : vector<2x32xf32>, vector<32x128xf32>, vector<2x128xf32> -> vector<2x128xf32>
    %c0_59 = arith.constant 0 : index
    %c0_60 = arith.constant 0 : index
    %204 = vector.load %arg13[%c0_59, %c0_60] : memref<1x128xf32, #tpu.memory_space<vmem>>, vector<1x128xf32>
    %205 = vector.broadcast %204 : vector<1x128xf32> to vector<2x128xf32>
    %206 = arith.addf %203, %205 : vector<2x128xf32>
    %c0_61 = arith.constant 0 : index
    %c0_62 = arith.constant 0 : index
    %207 = vector.load %arg12[%c0_61, %c0_62] : memref<32x128xf32, #tpu.memory_space<vmem>>, vector<32x128xf32>
    %cst_63 = arith.constant 0.000000e+00 : f32
    %208 = vector.broadcast %cst_63 : f32 to vector<2x32xf32>
    %cst_64 = arith.constant 0.000000e+00 : f32
    %209 = vector.broadcast %cst_64 : f32 to vector<2x32xf32>
    %cst_65 = arith.constant dense<0.000000e+00> : vector<2x128xf32>
    %210 = tpu.matmul %208, %207, %cst_65 {dimension_numbers = #tpu.dot_dimension_numbers<[1], [0], [0], [1], [0, 0, 1, 1], [], []>} : vector<2x32xf32>, vector<32x128xf32>, vector<2x128xf32> -> vector<2x128xf32>
    %211 = arith.addf %206, %210 : vector<2x128xf32>
    %212 = arith.negf %211 : vector<2x128xf32>
    %213 = math.exp %212 : vector<2x128xf32>
    %cst_66 = arith.constant 1.000000e+00 : f32
    %214 = vector.broadcast %cst_66 : f32 to vector<2x128xf32>
    %215 = arith.addf %214, %213 : vector<2x128xf32>
    %216 = arith.divf %214, %215 : vector<2x128xf32>
    %217 = math.tanh %211 : vector<2x128xf32>
    %218 = vector.extract_strided_slice %216 {offsets = [0, 32], sizes = [2, 32], strides = [1, 1]} : vector<2x128xf32> to vector<2x32xf32>
    %219 = arith.mulf %218, %209 : vector<2x32xf32>
    %220 = vector.extract_strided_slice %216 {offsets = [0, 0], sizes = [2, 32], strides = [1, 1]} : vector<2x128xf32> to vector<2x32xf32>
    %221 = vector.extract_strided_slice %217 {offsets = [0, 64], sizes = [2, 32], strides = [1, 1]} : vector<2x128xf32> to vector<2x32xf32>
    %222 = arith.mulf %220, %221 : vector<2x32xf32>
    %223 = arith.addf %219, %222 : vector<2x32xf32>
    %224 = vector.extract_strided_slice %216 {offsets = [0, 96], sizes = [2, 32], strides = [1, 1]} : vector<2x128xf32> to vector<2x32xf32>
    %225 = math.tanh %223 : vector<2x32xf32>
    %226 = arith.mulf %224, %225 : vector<2x32xf32>
    %cst_67 = arith.constant dense<0.000000e+00> : vector<2x128xf32>
    %227 = tpu.matmul %226, %207, %cst_67 {dimension_numbers = #tpu.dot_dimension_numbers<[1], [0], [0], [1], [0, 0, 1, 1], [], []>} : vector<2x32xf32>, vector<32x128xf32>, vector<2x128xf32> -> vector<2x128xf32>
    %228 = arith.addf %206, %227 : vector<2x128xf32>
    %229 = arith.negf %228 : vector<2x128xf32>
    %230 = math.exp %229 : vector<2x128xf32>
    %cst_68 = arith.constant 1.000000e+00 : f32
    %231 = vector.broadcast %cst_68 : f32 to vector<2x128xf32>
    %232 = arith.addf %231, %230 : vector<2x128xf32>
    %233 = arith.divf %231, %232 : vector<2x128xf32>
    %234 = math.tanh %228 : vector<2x128xf32>
    %235 = vector.extract_strided_slice %233 {offsets = [0, 32], sizes = [2, 32], strides = [1, 1]} : vector<2x128xf32> to vector<2x32xf32>
    %236 = arith.mulf %235, %223 : vector<2x32xf32>
    %237 = vector.extract_strided_slice %233 {offsets = [0, 0], sizes = [2, 32], strides = [1, 1]} : vector<2x128xf32> to vector<2x32xf32>
    %238 = vector.extract_strided_slice %234 {offsets = [0, 64], sizes = [2, 32], strides = [1, 1]} : vector<2x128xf32> to vector<2x32xf32>
    %239 = arith.mulf %237, %238 : vector<2x32xf32>
    %240 = arith.addf %236, %239 : vector<2x32xf32>
    %241 = vector.extract_strided_slice %233 {offsets = [0, 96], sizes = [2, 32], strides = [1, 1]} : vector<2x128xf32> to vector<2x32xf32>
    %242 = math.tanh %240 : vector<2x32xf32>
    %243 = arith.mulf %241, %242 : vector<2x32xf32>
    %cst_69 = arith.constant dense<0.000000e+00> : vector<2x128xf32>
    %244 = tpu.matmul %243, %207, %cst_69 {dimension_numbers = #tpu.dot_dimension_numbers<[1], [0], [0], [1], [0, 0, 1, 1], [], []>} : vector<2x32xf32>, vector<32x128xf32>, vector<2x128xf32> -> vector<2x128xf32>
    %245 = arith.addf %206, %244 : vector<2x128xf32>
    %246 = arith.negf %245 : vector<2x128xf32>
    %247 = math.exp %246 : vector<2x128xf32>
    %cst_70 = arith.constant 1.000000e+00 : f32
    %248 = vector.broadcast %cst_70 : f32 to vector<2x128xf32>
    %249 = arith.addf %248, %247 : vector<2x128xf32>
    %250 = arith.divf %248, %249 : vector<2x128xf32>
    %251 = math.tanh %245 : vector<2x128xf32>
    %252 = vector.extract_strided_slice %250 {offsets = [0, 32], sizes = [2, 32], strides = [1, 1]} : vector<2x128xf32> to vector<2x32xf32>
    %253 = arith.mulf %252, %240 : vector<2x32xf32>
    %254 = vector.extract_strided_slice %250 {offsets = [0, 0], sizes = [2, 32], strides = [1, 1]} : vector<2x128xf32> to vector<2x32xf32>
    %255 = vector.extract_strided_slice %251 {offsets = [0, 64], sizes = [2, 32], strides = [1, 1]} : vector<2x128xf32> to vector<2x32xf32>
    %256 = arith.mulf %254, %255 : vector<2x32xf32>
    %257 = arith.addf %253, %256 : vector<2x32xf32>
    %258 = vector.extract_strided_slice %250 {offsets = [0, 96], sizes = [2, 32], strides = [1, 1]} : vector<2x128xf32> to vector<2x32xf32>
    %259 = math.tanh %257 : vector<2x32xf32>
    %260 = arith.mulf %258, %259 : vector<2x32xf32>
    %cst_71 = arith.constant dense<0.000000e+00> : vector<2x128xf32>
    %261 = tpu.matmul %260, %207, %cst_71 {dimension_numbers = #tpu.dot_dimension_numbers<[1], [0], [0], [1], [0, 0, 1, 1], [], []>} : vector<2x32xf32>, vector<32x128xf32>, vector<2x128xf32> -> vector<2x128xf32>
    %262 = arith.addf %206, %261 : vector<2x128xf32>
    %263 = arith.negf %262 : vector<2x128xf32>
    %264 = math.exp %263 : vector<2x128xf32>
    %cst_72 = arith.constant 1.000000e+00 : f32
    %265 = vector.broadcast %cst_72 : f32 to vector<2x128xf32>
    %266 = arith.addf %265, %264 : vector<2x128xf32>
    %267 = arith.divf %265, %266 : vector<2x128xf32>
    %268 = math.tanh %262 : vector<2x128xf32>
    %269 = vector.extract_strided_slice %267 {offsets = [0, 32], sizes = [2, 32], strides = [1, 1]} : vector<2x128xf32> to vector<2x32xf32>
    %270 = arith.mulf %269, %257 : vector<2x32xf32>
    %271 = vector.extract_strided_slice %267 {offsets = [0, 0], sizes = [2, 32], strides = [1, 1]} : vector<2x128xf32> to vector<2x32xf32>
    %272 = vector.extract_strided_slice %268 {offsets = [0, 64], sizes = [2, 32], strides = [1, 1]} : vector<2x128xf32> to vector<2x32xf32>
    %273 = arith.mulf %271, %272 : vector<2x32xf32>
    %274 = arith.addf %270, %273 : vector<2x32xf32>
    %275 = vector.extract_strided_slice %267 {offsets = [0, 96], sizes = [2, 32], strides = [1, 1]} : vector<2x128xf32> to vector<2x32xf32>
    %276 = math.tanh %274 : vector<2x32xf32>
    %277 = arith.mulf %275, %276 : vector<2x32xf32>
    %cst_73 = arith.constant dense<0.000000e+00> : vector<2x128xf32>
    %278 = tpu.matmul %277, %207, %cst_73 {dimension_numbers = #tpu.dot_dimension_numbers<[1], [0], [0], [1], [0, 0, 1, 1], [], []>} : vector<2x32xf32>, vector<32x128xf32>, vector<2x128xf32> -> vector<2x128xf32>
    %279 = arith.addf %206, %278 : vector<2x128xf32>
    %280 = arith.negf %279 : vector<2x128xf32>
    %281 = math.exp %280 : vector<2x128xf32>
    %cst_74 = arith.constant 1.000000e+00 : f32
    %282 = vector.broadcast %cst_74 : f32 to vector<2x128xf32>
    %283 = arith.addf %282, %281 : vector<2x128xf32>
    %284 = arith.divf %282, %283 : vector<2x128xf32>
    %285 = math.tanh %279 : vector<2x128xf32>
    %286 = vector.extract_strided_slice %284 {offsets = [0, 32], sizes = [2, 32], strides = [1, 1]} : vector<2x128xf32> to vector<2x32xf32>
    %287 = arith.mulf %286, %274 : vector<2x32xf32>
    %288 = vector.extract_strided_slice %284 {offsets = [0, 0], sizes = [2, 32], strides = [1, 1]} : vector<2x128xf32> to vector<2x32xf32>
    %289 = vector.extract_strided_slice %285 {offsets = [0, 64], sizes = [2, 32], strides = [1, 1]} : vector<2x128xf32> to vector<2x32xf32>
    %290 = arith.mulf %288, %289 : vector<2x32xf32>
    %291 = arith.addf %287, %290 : vector<2x32xf32>
    %292 = vector.extract_strided_slice %284 {offsets = [0, 96], sizes = [2, 32], strides = [1, 1]} : vector<2x128xf32> to vector<2x32xf32>
    %293 = math.tanh %291 : vector<2x32xf32>
    %294 = arith.mulf %292, %293 : vector<2x32xf32>
    %295 = tpu.concatenate %226, %243, %260, %277, %294 in 0 : vector<2x32xf32>, vector<2x32xf32>, vector<2x32xf32>, vector<2x32xf32>, vector<2x32xf32> -> vector<10x32xf32>
    %c0_75 = arith.constant 0 : index
    %c0_76 = arith.constant 0 : index
    %296 = vector.load %arg14[%c0_75, %c0_76] : memref<32x2xf32, #tpu.memory_space<vmem>>, vector<32x2xf32>
    %cst_77 = arith.constant dense<0.000000e+00> : vector<10x2xf32>
    %297 = tpu.matmul %295, %296, %cst_77 {dimension_numbers = #tpu.dot_dimension_numbers<[1], [0], [0], [1], [0, 0, 1, 1], [], []>} : vector<10x32xf32>, vector<32x2xf32>, vector<10x2xf32> -> vector<10x2xf32>
    %c0_78 = arith.constant 0 : index
    %c0_79 = arith.constant 0 : index
    %298 = vector.load %arg15[%c0_78, %c0_79] : memref<1x2xf32, #tpu.memory_space<vmem>>, vector<1x2xf32>
    %299 = vector.broadcast %298 : vector<1x2xf32> to vector<10x2xf32>
    %300 = arith.addf %297, %299 : vector<10x2xf32>
    %c0_80 = arith.constant 0 : index
    %c0_81 = arith.constant 0 : index
    %301 = vector.load %arg16[%c0_80, %c0_81] : memref<10x2xf32, #tpu.memory_space<vmem>>, vector<10x2xf32>
    tpu.vector_store %arg16[%c0_80, %c0_81], %300 {strides = array<i32>} : memref<10x2xf32, #tpu.memory_space<vmem>>, vector<10x2xf32>,
    return
  }
}

</mosaic_0001>

<llo_original>
// kernel: trajectory_network_forward.1
$region0: #{trajectory_network_forward.1}
  #allocation0 [shape = 'u32[]', space=smem, size = 0x4, offset = 0x4, fixed_abs, tag = 'smem constant byte address 0x4 - core index']
  #allocation1 [shape = 'u32[144,128]{1,0:T(1,128)}', space=vmem, size = 0x12000, scoped, tag = 'internal scratch']
  #allocation2 [shape = 'f32[1,1]{1,0:T(1,128)S(1)}', space=vmem, size = 0x200, scoped, tag = 'scoped memory for trajectory_network_forward.1']
  %s0 = inlined_call_operand.vmem [shape: f32[40,7], index: 0, kind: input, shape index: {}]
  %s1 = inlined_call_operand.vmem [shape: f32[16,2], index: 1, kind: input, shape index: {}]
  %s2 = inlined_call_operand.vmem [shape: f32[16,3], index: 2, kind: input, shape index: {}]
  %s3 = inlined_call_operand.vmem [shape: f32[7,16], index: 3, kind: input, shape index: {}]
  %s4 = inlined_call_operand.vmem [shape: f32[1,16], index: 4, kind: input, shape index: {}]
  %s5 = inlined_call_operand.vmem [shape: f32[16,256], index: 5, kind: input, shape index: {}]
  %s6 = inlined_call_operand.vmem [shape: f32[1,256], index: 6, kind: input, shape index: {}]
  %s7 = inlined_call_operand.vmem [shape: f32[32,128], index: 7, kind: input, shape index: {}]
  %s8 = inlined_call_operand.vmem [shape: f32[32,128], index: 8, kind: input, shape index: {}]
  %s9 = inlined_call_operand.vmem [shape: f32[1,32], index: 9, kind: input, shape index: {}]
  %s10 = inlined_call_operand.<no memory space> [shape: f32[1,1], index: 10, kind: input, shape index: {}]
  %s11 = inlined_call_operand.vmem [shape: f32[32,128], index: 11, kind: input, shape index: {}]
  %s12 = inlined_call_operand.vmem [shape: f32[32,128], index: 12, kind: input, shape index: {}]
  %s13 = inlined_call_operand.vmem [shape: f32[1,128], index: 13, kind: input, shape index: {}]
  %s14 = inlined_call_operand.vmem [shape: f32[32,2], index: 14, kind: input, shape index: {}]
  %s15 = inlined_call_operand.vmem [shape: f32[1,2], index: 15, kind: input, shape index: {}]
  %s16 = inlined_call_operand.vmem [shape: f32[10,2], index: 16, kind: output, shape index: {}]
  %s17 = sld [smem:[#allocation0]]
  $region74: #{trajectory_network_forward.1} parent=0
    _
  %s19 = ssub.s32 1, %s17
  %s20 = scalar_select 0, %s19, %s17
  %v21 = vstv %s10
  %22 = vst [vmem:[#allocation2] sm:$0x1] %v21
  // Predicated region
  $region2: #{trajectory_network_forward.1} parent=0 // pred_check
    _
  $region3: #{trajectory_network_forward.1} parent=0 // pred_check_branch
    %24 = sbr.rel (0) target = $region5
  $region4: #{trajectory_network_forward.1} parent=0 // pred_region
    _
  $region5: #{trajectory_network_forward.1} parent=0 // pred_fallthru
    _
  // Predicated region
  $region6: #{trajectory_network_forward.1} parent=0 // pred_check
    _
  $region7: #{trajectory_network_forward.1} parent=0 // pred_check_branch
    %26 = sbr.rel (0) target = $region9
  $region8: #{trajectory_network_forward.1} parent=0 // pred_region
    _
  $region9: #{trajectory_network_forward.1} parent=0 // pred_fallthru
    _
  // Predicated region
  $region10: #{trajectory_network_forward.1} parent=0 // pred_check
    _
  $region11: #{trajectory_network_forward.1} parent=0 // pred_check_branch
    %28 = sbr.rel (0) target = $region13
  $region12: #{trajectory_network_forward.1} parent=0 // pred_region
    _
  $region13: #{trajectory_network_forward.1} parent=0 // pred_fallthru
    _
  // Predicated region
  $region14: #{trajectory_network_forward.1} parent=0 // pred_check
    _
  $region15: #{trajectory_network_forward.1} parent=0 // pred_check_branch
    %30 = sbr.rel (0) target = $region17
  $region16: #{trajectory_network_forward.1} parent=0 // pred_region
    _
  $region17: #{trajectory_network_forward.1} parent=0 // pred_fallthru
    _
  // Predicated region
  $region18: #{trajectory_network_forward.1} parent=0 // pred_check
    _
  $region19: #{trajectory_network_forward.1} parent=0 // pred_check_branch
    %32 = sbr.rel (0) target = $region21
  $region20: #{trajectory_network_forward.1} parent=0 // pred_region
    _
  $region21: #{trajectory_network_forward.1} parent=0 // pred_fallthru
    _
  // Predicated region
  $region22: #{trajectory_network_forward.1} parent=0 // pred_check
    _
  $region23: #{trajectory_network_forward.1} parent=0 // pred_check_branch
    %34 = sbr.rel (0) target = $region25
  $region24: #{trajectory_network_forward.1} parent=0 // pred_region
    _
  $region25: #{trajectory_network_forward.1} parent=0 // pred_fallthru
    _
  // Predicated region
  $region26: #{trajectory_network_forward.1} parent=0 // pred_check
    _
  $region27: #{trajectory_network_forward.1} parent=0 // pred_check_branch
    %36 = sbr.rel (0) target = $region29
  $region28: #{trajectory_network_forward.1} parent=0 // pred_region
    _
  $region29: #{trajectory_network_forward.1} parent=0 // pred_fallthru
    _
  // Predicated region
  $region30: #{trajectory_network_forward.1} parent=0 // pred_check
    _
  $region31: #{trajectory_network_forward.1} parent=0 // pred_check_branch
    %38 = sbr.rel (0) target = $region33
  $region32: #{trajectory_network_forward.1} parent=0 // pred_region
    _
  $region33: #{trajectory_network_forward.1} parent=0 // pred_fallthru
    _
  // Predicated region
  $region34: #{trajectory_network_forward.1} parent=0 // pred_check
    _
  $region35: #{trajectory_network_forward.1} parent=0 // pred_check_branch
    %40 = sbr.rel (0) target = $region37
  $region36: #{trajectory_network_forward.1} parent=0 // pred_region
    _
  $region37: #{trajectory_network_forward.1} parent=0 // pred_fallthru
    _
  // Predicated region
  $region38: #{trajectory_network_forward.1} parent=0 // pred_check
    _
  $region39: #{trajectory_network_forward.1} parent=0 // pred_check_branch
    %42 = sbr.rel (0) target = $region41
  $region40: #{trajectory_network_forward.1} parent=0 // pred_region
    _
  $region41: #{trajectory_network_forward.1} parent=0 // pred_fallthru
    _
  // Predicated region
  $region42: #{trajectory_network_forward.1} parent=0 // pred_check
    _
  $region43: #{trajectory_network_forward.1} parent=0 // pred_check_branch
    %44 = sbr.rel (0) target = $region45
  $region44: #{trajectory_network_forward.1} parent=0 // pred_region
    _
  $region45: #{trajectory_network_forward.1} parent=0 // pred_fallthru
    _
  // Predicated region
  $region46: #{trajectory_network_forward.1} parent=0 // pred_check
    _
  $region47: #{trajectory_network_forward.1} parent=0 // pred_check_branch
    %46 = sbr.rel (0) target = $region49
  $region48: #{trajectory_network_forward.1} parent=0 // pred_region
    _
  $region49: #{trajectory_network_forward.1} parent=0 // pred_fallthru
    _
  // Predicated region
  $region50: #{trajectory_network_forward.1} parent=0 // pred_check
    _
  $region51: #{trajectory_network_forward.1} parent=0 // pred_check_branch
    %48 = sbr.rel (0) target = $region53
  $region52: #{trajectory_network_forward.1} parent=0 // pred_region
    _
  $region53: #{trajectory_network_forward.1} parent=0 // pred_fallthru
    _
  // Predicated region
  $region54: #{trajectory_network_forward.1} parent=0 // pred_check
    _
  $region55: #{trajectory_network_forward.1} parent=0 // pred_check_branch
    %50 = sbr.rel (0) target = $region57
  $region56: #{trajectory_network_forward.1} parent=0 // pred_region
    _
  $region57: #{trajectory_network_forward.1} parent=0 // pred_fallthru
    _
  // Predicated region
  $region58: #{trajectory_network_forward.1} parent=0 // pred_check
    _
  $region59: #{trajectory_network_forward.1} parent=0 // pred_check_branch
    %52 = sbr.rel (0) target = $region61
  $region60: #{trajectory_network_forward.1} parent=0 // pred_region
    _
  $region61: #{trajectory_network_forward.1} parent=0 // pred_fallthru
    _
  // Predicated region
  $region62: #{trajectory_network_forward.1} parent=0 // pred_check
    _
  $region63: #{trajectory_network_forward.1} parent=0 // pred_check_branch
    %54 = sbr.rel (0) target = $region65
  $region64: #{trajectory_network_forward.1} parent=0 // pred_region
    _
  $region65: #{trajectory_network_forward.1} parent=0 // pred_fallthru
    _
  %v55 = vld [vmem:[%s0] sm:$0xff]
  %v56 = vld [vmem:[%s0 + $0x8] sm:$0xff]
  %v57 = vld [vmem:[%s0 + $0x10] sm:$0xff]
  %v58 = vld [vmem:[%s0 + $0x18] sm:$0xff]
  %v59 = vld [vmem:[%s0 + $0x20] sm:$0xff]
  %v60 = vld [vmem:[%s3] sm:$0x7f]
  %v61 = vld [vmem:[%s4] sm:$0x1]
  %v63 = vlaneseq
  %v64 = vshrl.u32 %v63, 7
  %v65 = vsub.s32 0, %v64
  %v66 = vrot.slane %v61, %v65
  %vm68 = vcmask 56320
  %v70 = vsel %vm68, %v55, 0
  %v73 = vsel %vm68, %v56, 0
  %v76 = vsel %vm68, %v57, 0
  %v79 = vsel %vm68, %v58, 0
  %v82 = vsel %vm68, %v59, 0
  %vm84 = vcmask 1046528
  %v86 = vsel %vm84, %v60, 0
  %88 = vmatprep.subr.mxu0 0.0
  %89 = vmatpush1.msra.mxu0 %v86
  %90 = vmatprep.subr.mxu0 0.0
  %91 = vmatpush1.msra.mxu0 0.0
  %92 = vmatprep.subr.mxu0 0.0
  %93 = vmatpush1.msra.mxu0 0.0
  %94 = vmatprep.subr.mxu0 0.0
  %95 = vmatpush1.msra.mxu0 0.0
  %96 = vmatprep.subr.mxu0 0.0
  %97 = vmatpush1.msra.mxu0 0.0
  %98 = vmatprep.subr.mxu0 0.0
  %99 = vmatpush1.msra.mxu0 0.0
  %100 = vmatprep.subr.mxu0 0.0
  %101 = vmatpush1.msra.mxu0 0.0
  %102 = vmatprep.subr.mxu0 0.0
  %103 = vmatpush1.msra.mxu0 0.0
  %104 = vmatprep.subr.mxu0 0.0
  %105 = vmatpush1.msra.mxu0 0.0
  %106 = vmatprep.subr.mxu0 0.0
  %107 = vmatpush1.msra.mxu0 0.0
  %108 = vmatprep.subr.mxu0 0.0
  %109 = vmatpush1.msra.mxu0 0.0
  %110 = vmatprep.subr.mxu0 0.0
  %111 = vmatpush1.msra.mxu0 0.0
  %112 = vmatprep.subr.mxu0 0.0
  %113 = vmatpush1.msra.mxu0 0.0
  %114 = vmatprep.subr.mxu0 0.0
  %115 = vmatpush1.msra.mxu0 0.0
  %116 = vmatprep.subr.mxu0 0.0
  %117 = vmatpush1.msra.mxu0 0.0
  %118 = vmatprep.subr.mxu0 0.0
  %119 = vmatpush1.msra.mxu0 0.0
  %120 = vmatprep.subr.mxu0 0.0
  %121 = vmatpush1.msra.mxu0 0.0
  %122 = vmatprep.subr.mxu0 0.0
  %123 = vmatpush1.msra.mxu0 0.0
  %124 = vmatprep.subr.mxu0 0.0
  %125 = vmatpush1.msra.mxu0 0.0
  %126 = vmatprep.subr.mxu0 0.0
  %127 = vmatpush1.msra.mxu0 0.0
  %128 = vmatprep.subr.mxu0 0.0
  %129 = vmatpush1.msra.mxu0 0.0
  %130 = vmatprep.subr.mxu0 0.0
  %131 = vmatpush1.msra.mxu0 0.0
  %132 = vmatprep.subr.mxu0 0.0
  %133 = vmatpush1.msra.mxu0 0.0
  %134 = vmatprep.subr.mxu0 0.0
  %135 = vmatpush1.msra.mxu0 0.0
  %136 = vmatprep.subr.mxu0 0.0
  %137 = vmatpush1.msra.mxu0 0.0
  %138 = vmatprep.subr.mxu0 0.0
  %139 = vmatpush1.msra.mxu0 0.0
  %140 = vmatprep.subr.mxu0 0.0
  %141 = vmatpush1.msra.mxu0 0.0
  %142 = vmatprep.subr.mxu0 0.0
  %143 = vmatpush1.msra.mxu0 0.0
  %144 = vmatprep.subr.mxu0 0.0
  %145 = vmatpush1.msra.mxu0 0.0
  %146 = vmatprep.subr.mxu0 0.0
  %147 = vmatpush1.msra.mxu0 0.0
  %148 = vmatprep.subr.mxu0 0.0
  %149 = vmatpush1.msra.mxu0 0.0
  %150 = vmatprep.subr.mxu0 0.0
  %151 = vmatpush1.msra.mxu0 0.0
  %152 = vmatprep.mubr.f32.mxu0 0.0
  %153 = vmatmul.mubr.f32.gmra.mrb[0].mxu0 %v70
  %v154 = vpop.f32.mrb[0].mxu0
  %v155 = vadd.f32 %v66, %v154
  %v156 = vpop.f32.mrb[0].mxu0
  %157 = vmatprep.mubr.f32.mxu0 0.0
  %158 = vmatmul.mubr.f32.gmra.mrb[0].mxu0 %v73
  %v159 = vpop.f32.mrb[0].mxu0
  %v160 = vadd.f32 %v66, %v159
  %v161 = vpop.f32.mrb[0].mxu0
  %162 = vmatprep.mubr.f32.mxu0 0.0
  %163 = vmatmul.mubr.f32.gmra.mrb[0].mxu0 %v76
  %v164 = vpop.f32.mrb[0].mxu0
  %v165 = vadd.f32 %v66, %v164
  %v166 = vpop.f32.mrb[0].mxu0
  %167 = vmatprep.mubr.f32.mxu0 0.0
  %168 = vmatmul.mubr.f32.gmra.mrb[0].mxu0 %v79
  %v169 = vpop.f32.mrb[0].mxu0
  %v170 = vadd.f32 %v66, %v169
  %v171 = vpop.f32.mrb[0].mxu0
  %172 = vmatprep.mubr.f32.mxu0 0.0
  %173 = vmatmul.mubr.f32.gmra.mrb[0].mxu0 %v82
  %v174 = vpop.f32.mrb[0].mxu0
  %v175 = vadd.f32 %v66, %v174
  %v176 = vpop.f32.mrb[0].mxu0
  %177 = vdwg.mxu0
  %vm178 = vcmp.gt.f32.partialorder %v155, 0.0
  %vm179 = vcmp.gt.f32.partialorder %v160, 0.0
  %vm180 = vcmp.gt.f32.partialorder %v165, 0.0
  %vm181 = vcmp.gt.f32.partialorder %v170, 0.0
  %vm182 = vcmp.gt.f32.partialorder %v175, 0.0
  %v183 = vmul.f32 %v155, 0.1
  %v184 = vmul.f32 %v160, 0.1
  %v185 = vmul.f32 %v165, 0.1
  %v186 = vmul.f32 %v170, 0.1
  %v187 = vmul.f32 %v175, 0.1
  %v188 = vsel %vm178, %v155, %v183
  %v189 = vsel %vm179, %v160, %v184
  %v190 = vsel %vm180, %v165, %v185
  %v191 = vsel %vm181, %v170, %v186
  %v192 = vsel %vm182, %v175, %v187
  %v193 = vld [vmem:[%s5] sm:$0xff]
  %v194 = vld [vmem:[%s5 + $0x8] sm:$0xff]
  %v195 = vld [vmem:[%s5 + $0x10] sm:$0xff]
  %v196 = vld [vmem:[%s5 + $0x18] sm:$0xff]
  %v197 = vld [vmem:[%s6] sm:$0x3]
  %v199 = vlaneseq
  %v200 = vshrl.u32 %v199, 7
  %v201 = vsub.s32 0, %v200
  %v202 = vrot.slane %v197, %v201
  %v203 = vlaneseq
  %v204 = vshrl.u32 %v203, 7
  %v205 = vsub.s32 1, %v204
  %v206 = vrot.slane %v197, %v205
  %vm209 = vcmask 130048
  %v211 = vsel %vm209, %v188, 0
  %v214 = vsel %vm209, %v189, 0
  %v217 = vsel %vm209, %v190, 0
  %v220 = vsel %vm209, %v191, 0
  %v223 = vsel %vm209, %v192, 0
  %225 = vmatprep.subr.mxu0 %v194
  %226 = vmatpush1.msra.mxu0 %v193
  %227 = vmatprep.subr.mxu0 %v196
  %228 = vmatpush1.msra.mxu0 %v195
  %229 = vmatprep.subr.mxu0 0.0
  %230 = vmatpush1.msra.mxu0 0.0
  %231 = vmatprep.subr.mxu0 0.0
  %232 = vmatpush1.msra.mxu0 0.0
  %233 = vmatprep.subr.mxu0 0.0
  %234 = vmatpush1.msra.mxu0 0.0
  %235 = vmatprep.subr.mxu0 0.0
  %236 = vmatpush1.msra.mxu0 0.0
  %237 = vmatprep.subr.mxu0 0.0
  %238 = vmatpush1.msra.mxu0 0.0
  %239 = vmatprep.subr.mxu0 0.0
  %240 = vmatpush1.msra.mxu0 0.0
  %241 = vmatprep.subr.mxu0 0.0
  %242 = vmatpush1.msra.mxu0 0.0
  %243 = vmatprep.subr.mxu0 0.0
  %244 = vmatpush1.msra.mxu0 0.0
  %245 = vmatprep.subr.mxu0 0.0
  %246 = vmatpush1.msra.mxu0 0.0
  %247 = vmatprep.subr.mxu0 0.0
  %248 = vmatpush1.msra.mxu0 0.0
  %249 = vmatprep.subr.mxu0 0.0
  %250 = vmatpush1.msra.mxu0 0.0
  %251 = vmatprep.subr.mxu0 0.0
  %252 = vmatpush1.msra.mxu0 0.0
  %253 = vmatprep.subr.mxu0 0.0
  %254 = vmatpush1.msra.mxu0 0.0
  %255 = vmatprep.subr.mxu0 0.0
  %256 = vmatpush1.msra.mxu0 0.0
  %257 = vmatprep.subr.mxu0 0.0
  %258 = vmatpush1.msra.mxu0 0.0
  %259 = vmatprep.subr.mxu0 0.0
  %260 = vmatpush1.msra.mxu0 0.0
  %261 = vmatprep.subr.mxu0 0.0
  %262 = vmatpush1.msra.mxu0 0.0
  %263 = vmatprep.subr.mxu0 0.0
  %264 = vmatpush1.msra.mxu0 0.0
  %265 = vmatprep.subr.mxu0 0.0
  %266 = vmatpush1.msra.mxu0 0.0
  %267 = vmatprep.subr.mxu0 0.0
  %268 = vmatpush1.msra.mxu0 0.0
  %269 = vmatprep.subr.mxu0 0.0
  %270 = vmatpush1.msra.mxu0 0.0
  %271 = vmatprep.subr.mxu0 0.0
  %272 = vmatpush1.msra.mxu0 0.0
  %273 = vmatprep.subr.mxu0 0.0
  %274 = vmatpush1.msra.mxu0 0.0
  %275 = vmatprep.subr.mxu0 0.0
  %276 = vmatpush1.msra.mxu0 0.0
  %277 = vmatprep.subr.mxu0 0.0
  %278 = vmatpush1.msra.mxu0 0.0
  %279 = vmatprep.subr.mxu0 0.0
  %280 = vmatpush1.msra.mxu0 0.0
  %281 = vmatprep.subr.mxu0 0.0
  %282 = vmatpush1.msra.mxu0 0.0
  %283 = vmatprep.subr.mxu0 0.0
  %284 = vmatpush1.msra.mxu0 0.0
  %285 = vmatprep.subr.mxu0 0.0
  %286 = vmatpush1.msra.mxu0 0.0
  %287 = vmatprep.subr.mxu0 0.0
  %288 = vmatpush1.msra.mxu0 0.0
  %289 = vmatprep.mubr.f32.mxu0 0.0
  %290 = vmatmul.mubr.f32.gmra.mrb[0].mxu0 %v211
  %v291 = vpop.f32.mrb[0].mxu0
  %v292 = vadd.f32 %v202, %v291
  %v293 = vpop.f32.mrb[0].mxu0
  %294 = vmatprep.mubr.f32.mxu0 0.0
  %295 = vmatmul.mubr.f32.gmra.mrb[0].mxu0 %v214
  %v296 = vpop.f32.mrb[0].mxu0
  %v297 = vadd.f32 %v202, %v296
  %v298 = vpop.f32.mrb[0].mxu0
  %299 = vmatprep.mubr.f32.mxu0 0.0
  %300 = vmatmul.mubr.f32.gmra.mrb[0].mxu0 %v217
  %v301 = vpop.f32.mrb[0].mxu0
  %v302 = vpop.f32.mrb[0].mxu0
  %v303 = vadd.f32 %v206, %v302
  %304 = vmatprep.mubr.f32.mxu0 0.0
  %305 = vmatmul.mubr.f32.gmra.mrb[0].mxu0 %v220
  %v306 = vpop.f32.mrb[0].mxu0
  %v307 = vpop.f32.mrb[0].mxu0
  %v308 = vadd.f32 %v206, %v307
  %309 = vmatprep.mubr.f32.mxu0 0.0
  %310 = vmatmul.mubr.f32.gmra.mrb[0].mxu0 %v223
  %v311 = vpop.f32.mrb[0].mxu0
  %v312 = vpop.f32.mrb[0].mxu0
  %v313 = vadd.f32 %v206, %v312
  %314 = vdwg.mxu0
  %v315 = vld [vmem:[%s9] sm:$0x1]
  %v316 = vld [vmem:[#allocation2] sm:$0x1]
  %v317 = vld [vmem:[%s7] sm:$0xff]
  %v318 = vld [vmem:[%s7 + $0x8] sm:$0xff]
  %v319 = vld [vmem:[%s7 + $0x10] sm:$0xff]
  %v320 = vld [vmem:[%s7 + $0x18] sm:$0xff]
  %v321 = vld [vmem:[%s8] sm:$0xff]
  %v322 = vld [vmem:[%s8 + $0x8] sm:$0xff]
  %v323 = vld [vmem:[%s8 + $0x10] sm:$0xff]
  %v324 = vld [vmem:[%s8 + $0x18] sm:$0xff]
  %vm325 = vcmask 261120
  %v327 = vsel %vm325, 0.0, 0
  %329 = vmatprep.subr.mxu0 0.0
  %330 = vmatpush1.msra.mxu0 %v317
  %331 = vmatprep.subr.mxu0 0.0
  %332 = vmatpush1.msra.mxu0 %v318
  %333 = vmatprep.subr.mxu0 0.0
  %334 = vmatpush1.msra.mxu0 %v319
  %335 = vmatprep.subr.mxu0 0.0
  %336 = vmatpush1.msra.mxu0 %v320
  %337 = vmatprep.subr.mxu0 0.0
  %338 = vmatpush1.msra.mxu0 0.0
  %339 = vmatprep.subr.mxu0 0.0
  %340 = vmatpush1.msra.mxu0 0.0
  %341 = vmatprep.subr.mxu0 0.0
  %342 = vmatpush1.msra.mxu0 0.0
  %343 = vmatprep.subr.mxu0 0.0
  %344 = vmatpush1.msra.mxu0 0.0
  %345 = vmatprep.subr.mxu0 0.0
  %346 = vmatpush1.msra.mxu0 0.0
  %347 = vmatprep.subr.mxu0 0.0
  %348 = vmatpush1.msra.mxu0 0.0
  %349 = vmatprep.subr.mxu0 0.0
  %350 = vmatpush1.msra.mxu0 0.0
  %351 = vmatprep.subr.mxu0 0.0
  %352 = vmatpush1.msra.mxu0 0.0
  %353 = vmatprep.subr.mxu0 0.0
  %354 = vmatpush1.msra.mxu0 0.0
  %355 = vmatprep.subr.mxu0 0.0
  %356 = vmatpush1.msra.mxu0 0.0
  %357 = vmatprep.subr.mxu0 0.0
  %358 = vmatpush1.msra.mxu0 0.0
  %359 = vmatprep.subr.mxu0 0.0
  %360 = vmatpush1.msra.mxu0 0.0
  %361 = vmatprep.subr.mxu0 0.0
  %362 = vmatpush1.msra.mxu0 0.0
  %363 = vmatprep.subr.mxu0 0.0
  %364 = vmatpush1.msra.mxu0 0.0
  %365 = vmatprep.subr.mxu0 0.0
  %366 = vmatpush1.msra.mxu0 0.0
  %367 = vmatprep.subr.mxu0 0.0
  %368 = vmatpush1.msra.mxu0 0.0
  %369 = vmatprep.subr.mxu0 0.0
  %370 = vmatpush1.msra.mxu0 0.0
  %371 = vmatprep.subr.mxu0 0.0
  %372 = vmatpush1.msra.mxu0 0.0
  %373 = vmatprep.subr.mxu0 0.0
  %374 = vmatpush1.msra.mxu0 0.0
  %375 = vmatprep.subr.mxu0 0.0
  %376 = vmatpush1.msra.mxu0 0.0
  %377 = vmatprep.subr.mxu0 0.0
  %378 = vmatpush1.msra.mxu0 0.0
  %379 = vmatprep.subr.mxu0 0.0
  %380 = vmatpush1.msra.mxu0 0.0
  %381 = vmatprep.subr.mxu0 0.0
  %382 = vmatpush1.msra.mxu0 0.0
  %383 = vmatprep.subr.mxu0 0.0
  %384 = vmatpush1.msra.mxu0 0.0
  %385 = vmatprep.subr.mxu0 0.0
  %386 = vmatpush1.msra.mxu0 0.0
  %387 = vmatprep.subr.mxu0 0.0
  %388 = vmatpush1.msra.mxu0 0.0
  %389 = vmatprep.subr.mxu0 0.0
  %390 = vmatpush1.msra.mxu0 0.0
  %391 = vmatprep.subr.mxu0 0.0
  %392 = vmatpush1.msra.mxu0 0.0
  %393 = vmatprep.mubr.f32.mxu0 0.0
  %394 = vmatmul.mubr.f32.gmra.mrb[0].mxu0 %v327
  %v395 = vpop.f32.mrb[0].mxu0
  %v396 = vadd.f32 0.0, %v395
  %v397 = vpop.f32.mrb[0].mxu0
  %398 = vdwg.mxu0
  %v399 = vadd.f32 %v292, %v396
  %v400 = vxor.u32 %v399, 2147483648
  %v401 = vmul.f32 %v400, 1.442695
  %v402 = vpow.pop %v401
  %v403 = vadd.f32 %v402, 1.0
  %v404 = vrcp.pop %v403
  %v405 = vmul.f32 1.0, %v404
  %v406 = vtanh.pop %v399
  %v407 = vmul.f32 %v405, 0.0
  %409 = vrot.lane.b32.xlu0 %v406, 64
  %v410 = vpop.permute.xlu0 %409
  %v412 = vmul.f32 %v405, %v410
  %414 = vrot.lane.b32.xlu0 %v412, 32
  %v415 = vpop.permute.xlu0 %414
  %v417 = vadd.f32 %v407, %v415
  %v418 = vtanh.pop %v417
  %420 = vrot.lane.b32.xlu0 %v418, 64
  %v421 = vpop.permute.xlu0 %420
  %v423 = vmul.f32 %v405, %v421
  %424 = vmatprep.subr.mxu0 0.0
  %425 = vmatpush1.msra.mxu0 %v321
  %426 = vmatprep.subr.mxu0 0.0
  %427 = vmatpush1.msra.mxu0 %v322
  %428 = vmatprep.subr.mxu0 0.0
  %429 = vmatpush1.msra.mxu0 %v323
  %430 = vmatprep.subr.mxu0 0.0
  %431 = vmatpush1.msra.mxu0 %v324
  %432 = vmatprep.subr.mxu0 0.0
  %433 = vmatpush1.msra.mxu0 0.0
  %434 = vmatprep.subr.mxu0 0.0
  %435 = vmatpush1.msra.mxu0 0.0
  %436 = vmatprep.subr.mxu0 0.0
  %437 = vmatpush1.msra.mxu0 0.0
  %438 = vmatprep.subr.mxu0 0.0
  %439 = vmatpush1.msra.mxu0 0.0
  %440 = vmatprep.subr.mxu0 0.0
  %441 = vmatpush1.msra.mxu0 0.0
  %442 = vmatprep.subr.mxu0 0.0
  %443 = vmatpush1.msra.mxu0 0.0
  %444 = vmatprep.subr.mxu0 0.0
  %445 = vmatpush1.msra.mxu0 0.0
  %446 = vmatprep.subr.mxu0 0.0
  %447 = vmatpush1.msra.mxu0 0.0
  %448 = vmatprep.subr.mxu0 0.0
  %449 = vmatpush1.msra.mxu0 0.0
  %450 = vmatprep.subr.mxu0 0.0
  %451 = vmatpush1.msra.mxu0 0.0
  %452 = vmatprep.subr.mxu0 0.0
  %453 = vmatpush1.msra.mxu0 0.0
  %454 = vmatprep.subr.mxu0 0.0
  %455 = vmatpush1.msra.mxu0 0.0
  %456 = vmatprep.subr.mxu0 0.0
  %457 = vmatpush1.msra.mxu0 0.0
  %458 = vmatprep.subr.mxu0 0.0
  %459 = vmatpush1.msra.mxu0 0.0
  %460 = vmatprep.subr.mxu0 0.0
  %461 = vmatpush1.msra.mxu0 0.0
  %462 = vmatprep.subr.mxu0 0.0
  %463 = vmatpush1.msra.mxu0 0.0
  %464 = vmatprep.subr.mxu0 0.0
  %465 = vmatpush1.msra.mxu0 0.0
  %466 = vmatprep.subr.mxu0 0.0
  %467 = vmatpush1.msra.mxu0 0.0
  %468 = vmatprep.subr.mxu0 0.0
  %469 = vmatpush1.msra.mxu0 0.0
  %470 = vmatprep.subr.mxu0 0.0
  %471 = vmatpush1.msra.mxu0 0.0
  %472 = vmatprep.subr.mxu0 0.0
  %473 = vmatpush1.msra.mxu0 0.0
  %474 = vmatprep.subr.mxu0 0.0
  %475 = vmatpush1.msra.mxu0 0.0
  %476 = vmatprep.subr.mxu0 0.0
  %477 = vmatpush1.msra.mxu0 0.0
  %478 = vmatprep.subr.mxu0 0.0
  %479 = vmatpush1.msra.mxu0 0.0
  %480 = vmatprep.subr.mxu0 0.0
  %481 = vmatpush1.msra.mxu0 0.0
  %482 = vmatprep.subr.mxu0 0.0
  %483 = vmatpush1.msra.mxu0 0.0
  %484 = vmatprep.subr.mxu0 0.0
  %485 = vmatpush1.msra.mxu0 0.0
  %486 = vmatprep.subr.mxu0 0.0
  %487 = vmatpush1.msra.mxu0 0.0
  %488 = vmatprep.mubr.f32.mxu0 0.0
  %489 = vmatmul.mubr.f32.gmra.mrb[0].mxu0 %v327
  %v490 = vpop.f32.mrb[0].mxu0
  %v491 = vadd.f32 0.0, %v490
  %v492 = vpop.f32.mrb[0].mxu0
  %493 = vdwg.mxu0
  %v494 = vadd.f32 %v303, %v491
  %v495 = vxor.u32 %v494, 2147483648
  %v496 = vmul.f32 %v495, 1.442695
  %v497 = vpow.pop %v496
  %v498 = vadd.f32 %v497, 1.0
  %v499 = vrcp.pop %v498
  %v500 = vmul.f32 1.0, %v499
  %v501 = vtanh.pop %v494
  %v502 = vmul.f32 %v500, 0.0
  %504 = vrot.lane.b32.xlu0 %v501, 64
  %v505 = vpop.permute.xlu0 %504
  %v507 = vmul.f32 %v500, %v505
  %509 = vrot.lane.b32.xlu0 %v507, 32
  %v510 = vpop.permute.xlu0 %509
  %v512 = vadd.f32 %v502, %v510
  %v513 = vtanh.pop %v512
  %515 = vrot.lane.b32.xlu0 %v513, 64
  %v516 = vpop.permute.xlu0 %515
  %v518 = vmul.f32 %v500, %v516
  %520 = vrot.lane.b32.xlu0 %v423, 32
  %v521 = vpop.permute.xlu0 %520
  %v522 = vsel %vm325, %v521, 0
  %524 = vmatprep.subr.mxu0 0.0
  %525 = vmatpush1.msra.mxu0 %v317
  %526 = vmatprep.subr.mxu0 0.0
  %527 = vmatpush1.msra.mxu0 %v318
  %528 = vmatprep.subr.mxu0 0.0
  %529 = vmatpush1.msra.mxu0 %v319
  %530 = vmatprep.subr.mxu0 0.0
  %531 = vmatpush1.msra.mxu0 %v320
  %532 = vmatprep.subr.mxu0 0.0
  %533 = vmatpush1.msra.mxu0 0.0
  %534 = vmatprep.subr.mxu0 0.0
  %535 = vmatpush1.msra.mxu0 0.0
  %536 = vmatprep.subr.mxu0 0.0
  %537 = vmatpush1.msra.mxu0 0.0
  %538 = vmatprep.subr.mxu0 0.0
  %539 = vmatpush1.msra.mxu0 0.0
  %540 = vmatprep.subr.mxu0 0.0
  %541 = vmatpush1.msra.mxu0 0.0
  %542 = vmatprep.subr.mxu0 0.0
  %543 = vmatpush1.msra.mxu0 0.0
  %544 = vmatprep.subr.mxu0 0.0
  %545 = vmatpush1.msra.mxu0 0.0
  %546 = vmatprep.subr.mxu0 0.0
  %547 = vmatpush1.msra.mxu0 0.0
  %548 = vmatprep.subr.mxu0 0.0
  %549 = vmatpush1.msra.mxu0 0.0
  %550 = vmatprep.subr.mxu0 0.0
  %551 = vmatpush1.msra.mxu0 0.0
  %552 = vmatprep.subr.mxu0 0.0
  %553 = vmatpush1.msra.mxu0 0.0
  %554 = vmatprep.subr.mxu0 0.0
  %555 = vmatpush1.msra.mxu0 0.0
  %556 = vmatprep.subr.mxu0 0.0
  %557 = vmatpush1.msra.mxu0 0.0
  %558 = vmatprep.subr.mxu0 0.0
  %559 = vmatpush1.msra.mxu0 0.0
  %560 = vmatprep.subr.mxu0 0.0
  %561 = vmatpush1.msra.mxu0 0.0
  %562 = vmatprep.subr.mxu0 0.0
  %563 = vmatpush1.msra.mxu0 0.0
  %564 = vmatprep.subr.mxu0 0.0
  %565 = vmatpush1.msra.mxu0 0.0
  %566 = vmatprep.subr.mxu0 0.0
  %567 = vmatpush1.msra.mxu0 0.0
  %568 = vmatprep.subr.mxu0 0.0
  %569 = vmatpush1.msra.mxu0 0.0
  %570 = vmatprep.subr.mxu0 0.0
  %571 = vmatpush1.msra.mxu0 0.0
  %572 = vmatprep.subr.mxu0 0.0
  %573 = vmatpush1.msra.mxu0 0.0
  %574 = vmatprep.subr.mxu0 0.0
  %575 = vmatpush1.msra.mxu0 0.0
  %576 = vmatprep.subr.mxu0 0.0
  %577 = vmatpush1.msra.mxu0 0.0
  %578 = vmatprep.subr.mxu0 0.0
  %579 = vmatpush1.msra.mxu0 0.0
  %580 = vmatprep.subr.mxu0 0.0
  %581 = vmatpush1.msra.mxu0 0.0
  %582 = vmatprep.subr.mxu0 0.0
  %583 = vmatpush1.msra.mxu0 0.0
  %584 = vmatprep.subr.mxu0 0.0
  %585 = vmatpush1.msra.mxu0 0.0
  %586 = vmatprep.subr.mxu0 0.0
  %587 = vmatpush1.msra.mxu0 0.0
  %588 = vmatprep.mubr.f32.mxu0 0.0
  %589 = vmatmul.mubr.f32.gmra.mrb[0].mxu0 %v522
  %v590 = vpop.f32.mrb[0].mxu0
  %v591 = vadd.f32 0.0, %v590
  %v592 = vpop.f32.mrb[0].mxu0
  %593 = vdwg.mxu0
  %v594 = vadd.f32 %v297, %v591
  %v595 = vxor.u32 %v594, 2147483648
  %v596 = vmul.f32 %v595, 1.442695
  %v597 = vpow.pop %v596
  %v598 = vadd.f32 %v597, 1.0
  %v599 = vrcp.pop %v598
  %v600 = vmul.f32 1.0, %v599
  %v601 = vtanh.pop %v594
  %v602 = vmul.f32 %v600, %v417
  %604 = vrot.lane.b32.xlu0 %v601, 64
  %v605 = vpop.permute.xlu0 %604
  %v607 = vmul.f32 %v600, %v605
  %609 = vrot.lane.b32.xlu0 %v607, 32
  %v610 = vpop.permute.xlu0 %609
  %v612 = vadd.f32 %v602, %v610
  %v613 = vtanh.pop %v612
  %615 = vrot.lane.b32.xlu0 %v613, 64
  %v616 = vpop.permute.xlu0 %615
  %v618 = vmul.f32 %v600, %v616
  %620 = vrot.lane.b32.xlu0 %v518, 32
  %v621 = vpop.permute.xlu0 %620
  %v622 = vsel %vm325, %v621, 0
  %624 = vmatprep.subr.mxu0 0.0
  %625 = vmatpush1.msra.mxu0 %v321
  %626 = vmatprep.subr.mxu0 0.0
  %627 = vmatpush1.msra.mxu0 %v322
  %628 = vmatprep.subr.mxu0 0.0
  %629 = vmatpush1.msra.mxu0 %v323
  %630 = vmatprep.subr.mxu0 0.0
  %631 = vmatpush1.msra.mxu0 %v324
  %632 = vmatprep.subr.mxu0 0.0
  %633 = vmatpush1.msra.mxu0 0.0
  %634 = vmatprep.subr.mxu0 0.0
  %635 = vmatpush1.msra.mxu0 0.0
  %636 = vmatprep.subr.mxu0 0.0
  %637 = vmatpush1.msra.mxu0 0.0
  %638 = vmatprep.subr.mxu0 0.0
  %639 = vmatpush1.msra.mxu0 0.0
  %640 = vmatprep.subr.mxu0 0.0
  %641 = vmatpush1.msra.mxu0 0.0
  %642 = vmatprep.subr.mxu0 0.0
  %643 = vmatpush1.msra.mxu0 0.0
  %644 = vmatprep.subr.mxu0 0.0
  %645 = vmatpush1.msra.mxu0 0.0
  %646 = vmatprep.subr.mxu0 0.0
  %647 = vmatpush1.msra.mxu0 0.0
  %648 = vmatprep.subr.mxu0 0.0
  %649 = vmatpush1.msra.mxu0 0.0
  %650 = vmatprep.subr.mxu0 0.0
  %651 = vmatpush1.msra.mxu0 0.0
  %652 = vmatprep.subr.mxu0 0.0
  %653 = vmatpush1.msra.mxu0 0.0
  %654 = vmatprep.subr.mxu0 0.0
  %655 = vmatpush1.msra.mxu0 0.0
  %656 = vmatprep.subr.mxu0 0.0
  %657 = vmatpush1.msra.mxu0 0.0
  %658 = vmatprep.subr.mxu0 0.0
  %659 = vmatpush1.msra.mxu0 0.0
  %660 = vmatprep.subr.mxu0 0.0
  %661 = vmatpush1.msra.mxu0 0.0
  %662 = vmatprep.subr.mxu0 0.0
  %663 = vmatpush1.msra.mxu0 0.0
  %664 = vmatprep.subr.mxu0 0.0
  %665 = vmatpush1.msra.mxu0 0.0
  %666 = vmatprep.subr.mxu0 0.0
  %667 = vmatpush1.msra.mxu0 0.0
  %668 = vmatprep.subr.mxu0 0.0
  %669 = vmatpush1.msra.mxu0 0.0
  %670 = vmatprep.subr.mxu0 0.0
  %671 = vmatpush1.msra.mxu0 0.0
  %672 = vmatprep.subr.mxu0 0.0
  %673 = vmatpush1.msra.mxu0 0.0
  %674 = vmatprep.subr.mxu0 0.0
  %675 = vmatpush1.msra.mxu0 0.0
  %676 = vmatprep.subr.mxu0 0.0
  %677 = vmatpush1.msra.mxu0 0.0
  %678 = vmatprep.subr.mxu0 0.0
  %679 = vmatpush1.msra.mxu0 0.0
  %680 = vmatprep.subr.mxu0 0.0
  %681 = vmatpush1.msra.mxu0 0.0
  %682 = vmatprep.subr.mxu0 0.0
  %683 = vmatpush1.msra.mxu0 0.0
  %684 = vmatprep.subr.mxu0 0.0
  %685 = vmatpush1.msra.mxu0 0.0
  %686 = vmatprep.subr.mxu0 0.0
  %687 = vmatpush1.msra.mxu0 0.0
  %688 = vmatprep.mubr.f32.mxu0 0.0
  %689 = vmatmul.mubr.f32.gmra.mrb[0].mxu0 %v622
  %v690 = vpop.f32.mrb[0].mxu0
  %v691 = vadd.f32 0.0, %v690
  %v692 = vpop.f32.mrb[0].mxu0
  %693 = vdwg.mxu0
  %v694 = vadd.f32 %v308, %v691
  %v695 = vxor.u32 %v694, 2147483648
  %v696 = vmul.f32 %v695, 1.442695
  %v697 = vpow.pop %v696
  %v698 = vadd.f32 %v697, 1.0
  %v699 = vrcp.pop %v698
  %v700 = vmul.f32 1.0, %v699
  %v701 = vtanh.pop %v694
  %v702 = vmul.f32 %v700, %v512
  %704 = vrot.lane.b32.xlu0 %v701, 64
  %v705 = vpop.permute.xlu0 %704
  %v707 = vmul.f32 %v700, %v705
  %709 = vrot.lane.b32.xlu0 %v707, 32
  %v710 = vpop.permute.xlu0 %709
  %v712 = vadd.f32 %v702, %v710
  %v713 = vtanh.pop %v712
  %715 = vrot.lane.b32.xlu0 %v713, 64
  %v716 = vpop.permute.xlu0 %715
  %v718 = vmul.f32 %v700, %v716
  %720 = vrot.lane.b32.xlu0 %v718, 32
  %v721 = vpop.permute.xlu0 %720
  %v722 = vsel %vm325, %v721, 0
  %724 = vmatprep.subr.mxu0 0.0
  %725 = vmatpush1.msra.mxu0 %v321
  %726 = vmatprep.subr.mxu0 0.0
  %727 = vmatpush1.msra.mxu0 %v322
  %728 = vmatprep.subr.mxu0 0.0
  %729 = vmatpush1.msra.mxu0 %v323
  %730 = vmatprep.subr.mxu0 0.0
  %731 = vmatpush1.msra.mxu0 %v324
  %732 = vmatprep.subr.mxu0 0.0
  %733 = vmatpush1.msra.mxu0 0.0
  %734 = vmatprep.subr.mxu0 0.0
  %735 = vmatpush1.msra.mxu0 0.0
  %736 = vmatprep.subr.mxu0 0.0
  %737 = vmatpush1.msra.mxu0 0.0
  %738 = vmatprep.subr.mxu0 0.0
  %739 = vmatpush1.msra.mxu0 0.0
  %740 = vmatprep.subr.mxu0 0.0
  %741 = vmatpush1.msra.mxu0 0.0
  %742 = vmatprep.subr.mxu0 0.0
  %743 = vmatpush1.msra.mxu0 0.0
  %744 = vmatprep.subr.mxu0 0.0
  %745 = vmatpush1.msra.mxu0 0.0
  %746 = vmatprep.subr.mxu0 0.0
  %747 = vmatpush1.msra.mxu0 0.0
  %748 = vmatprep.subr.mxu0 0.0
  %749 = vmatpush1.msra.mxu0 0.0
  %750 = vmatprep.subr.mxu0 0.0
  %751 = vmatpush1.msra.mxu0 0.0
  %752 = vmatprep.subr.mxu0 0.0
  %753 = vmatpush1.msra.mxu0 0.0
  %754 = vmatprep.subr.mxu0 0.0
  %755 = vmatpush1.msra.mxu0 0.0
  %756 = vmatprep.subr.mxu0 0.0
  %757 = vmatpush1.msra.mxu0 0.0
  %758 = vmatprep.subr.mxu0 0.0
  %759 = vmatpush1.msra.mxu0 0.0
  %760 = vmatprep.subr.mxu0 0.0
  %761 = vmatpush1.msra.mxu0 0.0
  %762 = vmatprep.subr.mxu0 0.0
  %763 = vmatpush1.msra.mxu0 0.0
  %764 = vmatprep.subr.mxu0 0.0
  %765 = vmatpush1.msra.mxu0 0.0
  %766 = vmatprep.subr.mxu0 0.0
  %767 = vmatpush1.msra.mxu0 0.0
  %768 = vmatprep.subr.mxu0 0.0
  %769 = vmatpush1.msra.mxu0 0.0
  %770 = vmatprep.subr.mxu0 0.0
  %771 = vmatpush1.msra.mxu0 0.0
  %772 = vmatprep.subr.mxu0 0.0
  %773 = vmatpush1.msra.mxu0 0.0
  %774 = vmatprep.subr.mxu0 0.0
  %775 = vmatpush1.msra.mxu0 0.0
  %776 = vmatprep.subr.mxu0 0.0
  %777 = vmatpush1.msra.mxu0 0.0
  %778 = vmatprep.subr.mxu0 0.0
  %779 = vmatpush1.msra.mxu0 0.0
  %780 = vmatprep.subr.mxu0 0.0
  %781 = vmatpush1.msra.mxu0 0.0
  %782 = vmatprep.subr.mxu0 0.0
  %783 = vmatpush1.msra.mxu0 0.0
  %784 = vmatprep.subr.mxu0 0.0
  %785 = vmatpush1.msra.mxu0 0.0
  %786 = vmatprep.subr.mxu0 0.0
  %787 = vmatpush1.msra.mxu0 0.0
  %788 = vmatprep.mubr.f32.mxu0 0.0
  %789 = vmatmul.mubr.f32.gmra.mrb[0].mxu0 %v722
  %v790 = vpop.f32.mrb[0].mxu0
  %v791 = vadd.f32 0.0, %v790
  %v792 = vpop.f32.mrb[0].mxu0
  %793 = vdwg.mxu0
  %v794 = vadd.f32 %v313, %v791
  %v795 = vxor.u32 %v794, 2147483648
  %v796 = vmul.f32 %v795, 1.442695
  %v797 = vpow.pop %v796
  %v798 = vadd.f32 %v797, 1.0
  %v799 = vrcp.pop %v798
  %v800 = vmul.f32 1.0, %v799
  %v801 = vtanh.pop %v794
  %v802 = vmul.f32 %v800, %v712
  %804 = vrot.lane.b32.xlu0 %v801, 64
  %v805 = vpop.permute.xlu0 %804
  %v807 = vmul.f32 %v800, %v805
  %809 = vrot.lane.b32.xlu0 %v807, 32
  %v810 = vpop.permute.xlu0 %809
  %v812 = vadd.f32 %v802, %v810
  %v813 = vtanh.pop %v812
  %815 = vrot.lane.b32.xlu0 %v813, 64
  %v816 = vpop.permute.xlu0 %815
  %v818 = vmul.f32 %v800, %v816
  %v819 = vtanh.pop %v423
  %v820 = vtanh.pop %v618
  %v822 = vlaneseq
  %v823 = vshrl.u32 %v822, 7
  %v824 = vsub.s32 0, %v823
  %v825 = vrot.slane %v315, %v824
  %827 = vrot.lane.b32.xlu0 %v825, 96
  %v828 = vpop.permute.xlu0 %827
  %v830 = vmul.f32 %v819, %v828
  %v831 = vmul.f32 %v820, %v828
  %834 = vrot.lane.b32.xlu0 %v830, 32
  %v835 = vpop.permute.xlu0 %834
  %836 = vrot.lane.b32.xlu0 %v831, 32
  %v837 = vpop.permute.xlu0 %836
  %v840 = vsel %vm325, %v835, 0.0
  %841 = vadd.xlane.f32.xlu0 %v840
  %v842 = vpop.xlane.xlu0 %841
  %v843 = vsel %vm325, %v837, 0.0
  %844 = vadd.xlane.f32.xlu0 %v843
  %v845 = vpop.xlane.xlu0 %844
  %v847 = vlaneseq
  %v848 = vshrl.u32 %v847, 7
  %v849 = vsub.s32 0, %v848
  %v850 = vrot.slane %v316, %v849
  %v852 = vadd.f32 %v842, %v850
  %v853 = vadd.f32 %v845, %v850
  %vm854 = vcmask 7168
  %v855 = vsel %vm854, %v852, -inf
  %v856 = vrot.slane %v855, 4
  %v857 = vmax.f32 %v855, %v856
  %v858 = vrot.slane %v857, 2
  %v859 = vmax.f32 %v857, %v858
  %v860 = vrot.slane %v859, 1
  %v861 = vmax.f32 %v859, %v860
  %v862 = vsel %vm854, %v853, -inf
  %v863 = vrot.slane %v862, 4
  %v864 = vmax.f32 %v862, %v863
  %v865 = vrot.slane %v864, 2
  %v866 = vmax.f32 %v864, %v865
  %v867 = vrot.slane %v866, 1
  %v868 = vmax.f32 %v866, %v867
  %v869 = vsub.f32 %v852, %v861
  %v870 = vsub.f32 %v853, %v868
  %v871 = vmul.f32 %v869, 1.442695
  %v872 = vpow.pop %v871
  %v873 = vmul.f32 %v870, 1.442695
  %v874 = vpow.pop %v873
  %v875 = vsel %vm854, %v872, 0.0
  %v876 = vrot.slane %v875, 4
  %v877 = vadd.f32 %v875, %v876
  %v878 = vrot.slane %v877, 2
  %v879 = vadd.f32 %v877, %v878
  %v880 = vrot.slane %v879, 1
  %v881 = vadd.f32 %v879, %v880
  %v882 = vsel %vm854, %v874, 0.0
  %v883 = vrot.slane %v882, 4
  %v884 = vadd.f32 %v882, %v883
  %v885 = vrot.slane %v884, 2
  %v886 = vadd.f32 %v884, %v885
  %v887 = vrot.slane %v886, 1
  %v888 = vadd.f32 %v886, %v887
  %v889 = vrcp.pop %v881
  %v890 = vmul.f32 %v872, %v889
  %v891 = vrcp.pop %v888
  %v892 = vmul.f32 %v874, %v891
  %894 = vset.pattern.permute.xlu0 0
  %895 = vperm.xlu0 %894, %v890
  %v896 = vpop.permute.xlu0 %895
  %899 = vset.pattern.permute.xlu0 0
  %900 = vperm.xlu0 %899, %v892
  %v901 = vpop.permute.xlu0 %900
  %v903 = vmul.f32 %v423, %v896
  %v904 = vmul.f32 %v618, %v901
  %vm905 = vcmask 1048320
  %v906 = vsel %vm905, %v903, 0.0
  %v907 = vrot.slane %v906, 4
  %v908 = vadd.f32 %v906, %v907
  %v909 = vrot.slane %v908, 2
  %v910 = vadd.f32 %v908, %v909
  %v911 = vrot.slane %v910, 1
  %v912 = vadd.f32 %v910, %v911
  %v913 = vsel %vm905, %v904, 0.0
  %v914 = vrot.slane %v913, 4
  %v915 = vadd.f32 %v913, %v914
  %v916 = vrot.slane %v915, 2
  %v917 = vadd.f32 %v915, %v916
  %v918 = vrot.slane %v917, 1
  %v919 = vadd.f32 %v917, %v918
  %v920 = vmax.f32 %v912, 0.0
  %v921 = vmax.f32 %v919, 0.0
  %v922 = vld [vmem:[%s1] sm:$0xff]
  %v923 = vld [vmem:[%s1 + $0x8] sm:$0xff]
  %v924 = vtanh.pop %v518
  %v925 = vtanh.pop %v718
  %v926 = vtanh.pop %v818
  %v927 = vmul.f32 %v924, %v828
  %v928 = vmul.f32 %v925, %v828
  %v929 = vmul.f32 %v926, %v828
  %933 = vrot.lane.b32.xlu0 %v927, 32
  %v934 = vpop.permute.xlu0 %933
  %935 = vrot.lane.b32.xlu0 %v928, 32
  %v936 = vpop.permute.xlu0 %935
  %937 = vrot.lane.b32.xlu0 %v929, 32
  %v938 = vpop.permute.xlu0 %937
  %v942 = vsel %vm325, %v934, 0.0
  %943 = vadd.xlane.f32.xlu0 %v942
  %v944 = vpop.xlane.xlu0 %943
  %v945 = vsel %vm325, %v936, 0.0
  %946 = vadd.xlane.f32.xlu0 %v945
  %v947 = vpop.xlane.xlu0 %946
  %v948 = vsel %vm325, %v938, 0.0
  %949 = vadd.xlane.f32.xlu0 %v948
  %v950 = vpop.xlane.xlu0 %949
  %v951 = vadd.f32 %v944, %v850
  %v952 = vadd.f32 %v947, %v850
  %v953 = vadd.f32 %v950, %v850
  %v954 = vsel %vm854, %v951, -inf
  %v955 = vrot.slane %v954, 4
  %v956 = vmax.f32 %v954, %v955
  %v957 = vrot.slane %v956, 2
  %v958 = vmax.f32 %v956, %v957
  %v959 = vrot.slane %v958, 1
  %v960 = vmax.f32 %v958, %v959
  %v961 = vsel %vm854, %v952, -inf
  %v962 = vrot.slane %v961, 4
  %v963 = vmax.f32 %v961, %v962
  %v964 = vrot.slane %v963, 2
  %v965 = vmax.f32 %v963, %v964
  %v966 = vrot.slane %v965, 1
  %v967 = vmax.f32 %v965, %v966
  %v968 = vsel %vm854, %v953, -inf
  %v969 = vrot.slane %v968, 4
  %v970 = vmax.f32 %v968, %v969
  %v971 = vrot.slane %v970, 2
  %v972 = vmax.f32 %v970, %v971
  %v973 = vrot.slane %v972, 1
  %v974 = vmax.f32 %v972, %v973
  %v975 = vsub.f32 %v951, %v960
  %v976 = vsub.f32 %v952, %v967
  %v977 = vsub.f32 %v953, %v974
  %v978 = vmul.f32 %v975, 1.442695
  %v979 = vpow.pop %v978
  %v980 = vmul.f32 %v976, 1.442695
  %v981 = vpow.pop %v980
  %v982 = vmul.f32 %v977, 1.442695
  %v983 = vpow.pop %v982
  %v984 = vsel %vm854, %v979, 0.0
  %v985 = vrot.slane %v984, 4
  %v986 = vadd.f32 %v984, %v985
  %v987 = vrot.slane %v986, 2
  %v988 = vadd.f32 %v986, %v987
  %v989 = vrot.slane %v988, 1
  %v990 = vadd.f32 %v988, %v989
  %v991 = vsel %vm854, %v981, 0.0
  %v992 = vrot.slane %v991, 4
  %v993 = vadd.f32 %v991, %v992
  %v994 = vrot.slane %v993, 2
  %v995 = vadd.f32 %v993, %v994
  %v996 = vrot.slane %v995, 1
  %v997 = vadd.f32 %v995, %v996
  %v998 = vsel %vm854, %v983, 0.0
  %v999 = vrot.slane %v998, 4
  %v1000 = vadd.f32 %v998, %v999
  %v1001 = vrot.slane %v1000, 2
  %v1002 = vadd.f32 %v1000, %v1001
  %v1003 = vrot.slane %v1002, 1
  %v1004 = vadd.f32 %v1002, %v1003
  %v1005 = vrcp.pop %v990
  %v1006 = vmul.f32 %v979, %v1005
  %v1007 = vrcp.pop %v997
  %v1008 = vmul.f32 %v981, %v1007
  %v1009 = vrcp.pop %v1004
  %v1010 = vmul.f32 %v983, %v1009
  %1012 = vset.pattern.permute.xlu0 0
  %1013 = vperm.xlu0 %1012, %v1006
  %v1014 = vpop.permute.xlu0 %1013
  %1017 = vset.pattern.permute.xlu0 0
  %1018 = vperm.xlu0 %1017, %v1008
  %v1019 = vpop.permute.xlu0 %1018
  %1022 = vset.pattern.permute.xlu0 0
  %1023 = vperm.xlu0 %1022, %v1010
  %v1024 = vpop.permute.xlu0 %1023
  %v1026 = vmul.f32 %v518, %v1014
  %v1027 = vmul.f32 %v718, %v1019
  %v1028 = vmul.f32 %v818, %v1024
  %v1029 = vsel %vm905, %v1026, 0.0
  %v1030 = vrot.slane %v1029, 4
  %v1031 = vadd.f32 %v1029, %v1030
  %v1032 = vrot.slane %v1031, 2
  %v1033 = vadd.f32 %v1031, %v1032
  %v1034 = vrot.slane %v1033, 1
  %v1035 = vadd.f32 %v1033, %v1034
  %v1036 = vsel %vm905, %v1027, 0.0
  %v1037 = vrot.slane %v1036, 4
  %v1038 = vadd.f32 %v1036, %v1037
  %v1039 = vrot.slane %v1038, 2
  %v1040 = vadd.f32 %v1038, %v1039
  %v1041 = vrot.slane %v1040, 1
  %v1042 = vadd.f32 %v1040, %v1041
  %v1043 = vsel %vm905, %v1028, 0.0
  %v1044 = vrot.slane %v1043, 4
  %v1045 = vadd.f32 %v1043, %v1044
  %v1046 = vrot.slane %v1045, 2
  %v1047 = vadd.f32 %v1045, %v1046
  %v1048 = vrot.slane %v1047, 1
  %v1049 = vadd.f32 %v1047, %v1048
  %v1050 = vmax.f32 %v1035, 0.0
  %v1051 = vmax.f32 %v1042, 0.0
  %v1052 = vmax.f32 %v1049, 0.0
  %v1053 = vld [vmem:[%s2] sm:$0xff]
  %v1054 = vld [vmem:[%s2 + $0x8] sm:$0xff]
  %vm1058 = vcmask 1041409
  %v1059 = vsel %vm1058, %v1051, %v1050
  %vm1060 = vcmask 1042434
  %v1061 = vsel %vm1060, %v1052, %v1059
  %1062 = vrot.lane.b32.xlu0 %v1061, 32
  %v1063 = vpop.permute.xlu0 %1062
  %vm1064 = vcmask 23552
  %v1066 = vsel %vm1064, %v1053, 0
  %v1069 = vsel %vm1064, %v1054, 0
  %vm1071 = vcmask 1042432
  %v1072 = vsel %vm1071, %v1063, 0
  %1074 = vmatprep.subr.mxu0 0.0
  %1075 = vmatpush1.msra.mxu0 %v1072
  %1076 = vmatprep.subr.mxu0 0.0
  %1077 = vmatpush1.msra.mxu0 0.0
  %1078 = vmatprep.subr.mxu0 0.0
  %1079 = vmatpush1.msra.mxu0 0.0
  %1080 = vmatprep.subr.mxu0 0.0
  %1081 = vmatpush1.msra.mxu0 0.0
  %1082 = vmatprep.subr.mxu0 0.0
  %1083 = vmatpush1.msra.mxu0 0.0
  %1084 = vmatprep.subr.mxu0 0.0
  %1085 = vmatpush1.msra.mxu0 0.0
  %1086 = vmatprep.subr.mxu0 0.0
  %1087 = vmatpush1.msra.mxu0 0.0
  %1088 = vmatprep.subr.mxu0 0.0
  %1089 = vmatpush1.msra.mxu0 0.0
  %1090 = vmatprep.subr.mxu0 0.0
  %1091 = vmatpush1.msra.mxu0 0.0
  %1092 = vmatprep.subr.mxu0 0.0
  %1093 = vmatpush1.msra.mxu0 0.0
  %1094 = vmatprep.subr.mxu0 0.0
  %1095 = vmatpush1.msra.mxu0 0.0
  %1096 = vmatprep.subr.mxu0 0.0
  %1097 = vmatpush1.msra.mxu0 0.0
  %1098 = vmatprep.subr.mxu0 0.0
  %1099 = vmatpush1.msra.mxu0 0.0
  %1100 = vmatprep.subr.mxu0 0.0
  %1101 = vmatpush1.msra.mxu0 0.0
  %1102 = vmatprep.subr.mxu0 0.0
  %1103 = vmatpush1.msra.mxu0 0.0
  %1104 = vmatprep.subr.mxu0 0.0
  %1105 = vmatpush1.msra.mxu0 0.0
  %1106 = vmatprep.subr.mxu0 0.0
  %1107 = vmatpush1.msra.mxu0 0.0
  %1108 = vmatprep.subr.mxu0 0.0
  %1109 = vmatpush1.msra.mxu0 0.0
  %1110 = vmatprep.subr.mxu0 0.0
  %1111 = vmatpush1.msra.mxu0 0.0
  %1112 = vmatprep.subr.mxu0 0.0
  %1113 = vmatpush1.msra.mxu0 0.0
  %1114 = vmatprep.subr.mxu0 0.0
  %1115 = vmatpush1.msra.mxu0 0.0
  %1116 = vmatprep.subr.mxu0 0.0
  %1117 = vmatpush1.msra.mxu0 0.0
  %1118 = vmatprep.subr.mxu0 0.0
  %1119 = vmatpush1.msra.mxu0 0.0
  %1120 = vmatprep.subr.mxu0 0.0
  %1121 = vmatpush1.msra.mxu0 0.0
  %1122 = vmatprep.subr.mxu0 0.0
  %1123 = vmatpush1.msra.mxu0 0.0
  %1124 = vmatprep.subr.mxu0 0.0
  %1125 = vmatpush1.msra.mxu0 0.0
  %1126 = vmatprep.subr.mxu0 0.0
  %1127 = vmatpush1.msra.mxu0 0.0
  %1128 = vmatprep.subr.mxu0 0.0
  %1129 = vmatpush1.msra.mxu0 0.0
  %1130 = vmatprep.subr.mxu0 0.0
  %1131 = vmatpush1.msra.mxu0 0.0
  %1132 = vmatprep.subr.mxu0 0.0
  %1133 = vmatpush1.msra.mxu0 0.0
  %1134 = vmatprep.subr.mxu0 0.0
  %1135 = vmatpush1.msra.mxu0 0.0
  %1136 = vmatprep.subr.mxu0 0.0
  %1137 = vmatpush1.msra.mxu0 0.0
  %1138 = vmatprep.mubr.f32.mxu0 0.0
  %1139 = vmatmul.mubr.f32.gmra.mrb[0].mxu0 %v1066
  %v1140 = vpop.f32.mrb[0].mxu0
  %v1141 = vadd.f32 0.0, %v1140
  %v1142 = vpop.f32.mrb[0].mxu0
  %1143 = vmatprep.mubr.f32.mxu0 0.0
  %1144 = vmatmul.mubr.f32.gmra.mrb[0].mxu0 %v1069
  %v1145 = vpop.f32.mrb[0].mxu0
  %v1146 = vadd.f32 0.0, %v1145
  %v1147 = vpop.f32.mrb[0].mxu0
  %1148 = vdwg.mxu0
  %v1151 = vsel %vm1058, %v921, %v920
  %1152 = vrot.lane.b32.xlu0 %v1151, 32
  %v1153 = vpop.permute.xlu0 %1152
  %vm1154 = vcmask 15360
  %v1156 = vsel %vm1154, %v922, 0
  %v1159 = vsel %vm1154, %v923, 0
  %vm1161 = vcmask 1041408
  %v1162 = vsel %vm1161, %v1153, 0
  %1164 = vmatprep.subr.mxu0 0.0
  %1165 = vmatpush1.msra.mxu0 %v1162
  %1166 = vmatprep.subr.mxu0 0.0
  %1167 = vmatpush1.msra.mxu0 0.0
  %1168 = vmatprep.subr.mxu0 0.0
  %1169 = vmatpush1.msra.mxu0 0.0
  %1170 = vmatprep.subr.mxu0 0.0
  %1171 = vmatpush1.msra.mxu0 0.0
  %1172 = vmatprep.subr.mxu0 0.0
  %1173 = vmatpush1.msra.mxu0 0.0
  %1174 = vmatprep.subr.mxu0 0.0
  %1175 = vmatpush1.msra.mxu0 0.0
  %1176 = vmatprep.subr.mxu0 0.0
  %1177 = vmatpush1.msra.mxu0 0.0
  %1178 = vmatprep.subr.mxu0 0.0
  %1179 = vmatpush1.msra.mxu0 0.0
  %1180 = vmatprep.subr.mxu0 0.0
  %1181 = vmatpush1.msra.mxu0 0.0
  %1182 = vmatprep.subr.mxu0 0.0
  %1183 = vmatpush1.msra.mxu0 0.0
  %1184 = vmatprep.subr.mxu0 0.0
  %1185 = vmatpush1.msra.mxu0 0.0
  %1186 = vmatprep.subr.mxu0 0.0
  %1187 = vmatpush1.msra.mxu0 0.0
  %1188 = vmatprep.subr.mxu0 0.0
  %1189 = vmatpush1.msra.mxu0 0.0
  %1190 = vmatprep.subr.mxu0 0.0
  %1191 = vmatpush1.msra.mxu0 0.0
  %1192 = vmatprep.subr.mxu0 0.0
  %1193 = vmatpush1.msra.mxu0 0.0
  %1194 = vmatprep.subr.mxu0 0.0
  %1195 = vmatpush1.msra.mxu0 0.0
  %1196 = vmatprep.subr.mxu0 0.0
  %1197 = vmatpush1.msra.mxu0 0.0
  %1198 = vmatprep.subr.mxu0 0.0
  %1199 = vmatpush1.msra.mxu0 0.0
  %1200 = vmatprep.subr.mxu0 0.0
  %1201 = vmatpush1.msra.mxu0 0.0
  %1202 = vmatprep.subr.mxu0 0.0
  %1203 = vmatpush1.msra.mxu0 0.0
  %1204 = vmatprep.subr.mxu0 0.0
  %1205 = vmatpush1.msra.mxu0 0.0
  %1206 = vmatprep.subr.mxu0 0.0
  %1207 = vmatpush1.msra.mxu0 0.0
  %1208 = vmatprep.subr.mxu0 0.0
  %1209 = vmatpush1.msra.mxu0 0.0
  %1210 = vmatprep.subr.mxu0 0.0
  %1211 = vmatpush1.msra.mxu0 0.0
  %1212 = vmatprep.subr.mxu0 0.0
  %1213 = vmatpush1.msra.mxu0 0.0
  %1214 = vmatprep.subr.mxu0 0.0
  %1215 = vmatpush1.msra.mxu0 0.0
  %1216 = vmatprep.subr.mxu0 0.0
  %1217 = vmatpush1.msra.mxu0 0.0
  %1218 = vmatprep.subr.mxu0 0.0
  %1219 = vmatpush1.msra.mxu0 0.0
  %1220 = vmatprep.subr.mxu0 0.0
  %1221 = vmatpush1.msra.mxu0 0.0
  %1222 = vmatprep.subr.mxu0 0.0
  %1223 = vmatpush1.msra.mxu0 0.0
  %1224 = vmatprep.subr.mxu0 0.0
  %1225 = vmatpush1.msra.mxu0 0.0
  %1226 = vmatprep.subr.mxu0 0.0
  %1227 = vmatpush1.msra.mxu0 0.0
  %1228 = vmatprep.mubr.f32.mxu0 0.0
  %1229 = vmatmul.mubr.f32.gmra.mrb[0].mxu0 %v1156
  %v1230 = vpop.f32.mrb[0].mxu0
  %v1231 = vadd.f32 %v1141, %v1230
  %v1232 = vpop.f32.mrb[0].mxu0
  %1233 = vmatprep.mubr.f32.mxu0 0.0
  %1234 = vmatmul.mubr.f32.gmra.mrb[0].mxu0 %v1159
  %v1235 = vpop.f32.mrb[0].mxu0
  %v1236 = vadd.f32 %v1146, %v1235
  %v1237 = vpop.f32.mrb[0].mxu0
  %1238 = vdwg.mxu0
  %v1239 = vtanh.pop %v1231
  %v1240 = vtanh.pop %v1236
  %v1241 = vmul.f32 %v1239, %v825
  %v1242 = vmul.f32 %v1240, %v825
  %v1243 = vsel %vm325, %v1241, 0.0
  %1244 = vadd.xlane.f32.xlu0 %v1243
  %v1245 = vpop.xlane.xlu0 %1244
  %v1246 = vsel %vm325, %v1242, 0.0
  %1247 = vadd.xlane.f32.xlu0 %v1246
  %v1248 = vpop.xlane.xlu0 %1247
  %v1249 = vadd.f32 %v1245, %v850
  %v1250 = vadd.f32 %v1248, %v850
  %v1251 = vlaneseq
  %v1252 = vshrl.u32 %v1251, 7
  %vm1253 = vcmp.lt.s32.totalorder %v1252, 7
  %v1254 = vsel %vm1253, %v1249, -1e+30
  %v1255 = vsel %vm1253, %v1250, -1e+30
  %v1256 = vsel %vm854, %v1254, -inf
  %v1257 = vrot.slane %v1256, 4
  %v1258 = vmax.f32 %v1256, %v1257
  %v1259 = vrot.slane %v1258, 2
  %v1260 = vmax.f32 %v1258, %v1259
  %v1261 = vrot.slane %v1260, 1
  %v1262 = vmax.f32 %v1260, %v1261
  %v1263 = vsel %vm854, %v1255, -inf
  %v1264 = vrot.slane %v1263, 4
  %v1265 = vmax.f32 %v1263, %v1264
  %v1266 = vrot.slane %v1265, 2
  %v1267 = vmax.f32 %v1265, %v1266
  %v1268 = vrot.slane %v1267, 1
  %v1269 = vmax.f32 %v1267, %v1268
  %v1270 = vsub.f32 %v1254, %v1262
  %v1271 = vsub.f32 %v1255, %v1269
  %v1272 = vmul.f32 %v1270, 1.442695
  %v1273 = vpow.pop %v1272
  %v1274 = vmul.f32 %v1271, 1.442695
  %v1275 = vpow.pop %v1274
  %v1276 = vsel %vm854, %v1273, 0.0
  %v1277 = vrot.slane %v1276, 4
  %v1278 = vadd.f32 %v1276, %v1277
  %v1279 = vrot.slane %v1278, 2
  %v1280 = vadd.f32 %v1278, %v1279
  %v1281 = vrot.slane %v1280, 1
  %v1282 = vadd.f32 %v1280, %v1281
  %v1283 = vsel %vm854, %v1275, 0.0
  %v1284 = vrot.slane %v1283, 4
  %v1285 = vadd.f32 %v1283, %v1284
  %v1286 = vrot.slane %v1285, 2
  %v1287 = vadd.f32 %v1285, %v1286
  %v1288 = vrot.slane %v1287, 1
  %v1289 = vadd.f32 %v1287, %v1288
  %v1290 = vrcp.pop %v1282
  %v1291 = vmul.f32 %v1273, %v1290
  %v1292 = vrcp.pop %v1289
  %v1293 = vmul.f32 %v1275, %v1292
  %1295 = vset.pattern.permute.xlu0 0
  %1296 = vperm.xlu0 %1295, %v1291
  %v1297 = vpop.permute.xlu0 %1296
  %1300 = vset.pattern.permute.xlu0 0
  %1301 = vperm.xlu0 %1300, %v1293
  %v1302 = vpop.permute.xlu0 %1301
  %v1304 = vmul.f32 %v1231, %v1297
  %v1305 = vmul.f32 %v1236, %v1302
  %v1306 = vsel %vm325, %v1304, 0.0
  %v1307 = vrot.slane %v1306, 4
  %v1308 = vadd.f32 %v1306, %v1307
  %v1309 = vrot.slane %v1308, 2
  %v1310 = vadd.f32 %v1308, %v1309
  %v1311 = vrot.slane %v1310, 1
  %v1312 = vadd.f32 %v1310, %v1311
  %v1313 = vsel %vm325, %v1305, 0.0
  %v1314 = vrot.slane %v1313, 4
  %v1315 = vadd.f32 %v1313, %v1314
  %v1316 = vrot.slane %v1315, 2
  %v1317 = vadd.f32 %v1315, %v1316
  %v1318 = vrot.slane %v1317, 1
  %v1319 = vadd.f32 %v1317, %v1318
  %v1320 = vmax.f32 %v1312, 0.0
  %v1321 = vmax.f32 %v1319, 0.0
  %v1322 = vld [vmem:[%s11] sm:$0xff]
  %v1323 = vld [vmem:[%s11 + $0x8] sm:$0xff]
  %v1324 = vld [vmem:[%s11 + $0x10] sm:$0xff]
  %v1325 = vld [vmem:[%s11 + $0x18] sm:$0xff]
  %v1326 = vld [vmem:[%s13] sm:$0x1]
  %v1328 = vlaneseq
  %v1329 = vshrl.u32 %v1328, 7
  %v1330 = vsub.s32 0, %v1329
  %v1331 = vrot.slane %v1326, %v1330
  %v1335 = vsel %vm1058, %v1321, %v1320
  %v1336 = vsel %vm325, %v1335, 0
  %1338 = vmatprep.subr.mxu0 0.0
  %1339 = vmatpush1.msra.mxu0 %v1322
  %1340 = vmatprep.subr.mxu0 0.0
  %1341 = vmatpush1.msra.mxu0 %v1323
  %1342 = vmatprep.subr.mxu0 0.0
  %1343 = vmatpush1.msra.mxu0 %v1324
  %1344 = vmatprep.subr.mxu0 0.0
  %1345 = vmatpush1.msra.mxu0 %v1325
  %1346 = vmatprep.subr.mxu0 0.0
  %1347 = vmatpush1.msra.mxu0 0.0
  %1348 = vmatprep.subr.mxu0 0.0
  %1349 = vmatpush1.msra.mxu0 0.0
  %1350 = vmatprep.subr.mxu0 0.0
  %1351 = vmatpush1.msra.mxu0 0.0
  %1352 = vmatprep.subr.mxu0 0.0
  %1353 = vmatpush1.msra.mxu0 0.0
  %1354 = vmatprep.subr.mxu0 0.0
  %1355 = vmatpush1.msra.mxu0 0.0
  %1356 = vmatprep.subr.mxu0 0.0
  %1357 = vmatpush1.msra.mxu0 0.0
  %1358 = vmatprep.subr.mxu0 0.0
  %1359 = vmatpush1.msra.mxu0 0.0
  %1360 = vmatprep.subr.mxu0 0.0
  %1361 = vmatpush1.msra.mxu0 0.0
  %1362 = vmatprep.subr.mxu0 0.0
  %1363 = vmatpush1.msra.mxu0 0.0
  %1364 = vmatprep.subr.mxu0 0.0
  %1365 = vmatpush1.msra.mxu0 0.0
  %1366 = vmatprep.subr.mxu0 0.0
  %1367 = vmatpush1.msra.mxu0 0.0
  %1368 = vmatprep.subr.mxu0 0.0
  %1369 = vmatpush1.msra.mxu0 0.0
  %1370 = vmatprep.subr.mxu0 0.0
  %1371 = vmatpush1.msra.mxu0 0.0
  %1372 = vmatprep.subr.mxu0 0.0
  %1373 = vmatpush1.msra.mxu0 0.0
  %1374 = vmatprep.subr.mxu0 0.0
  %1375 = vmatpush1.msra.mxu0 0.0
  %1376 = vmatprep.subr.mxu0 0.0
  %1377 = vmatpush1.msra.mxu0 0.0
  %1378 = vmatprep.subr.mxu0 0.0
  %1379 = vmatpush1.msra.mxu0 0.0
  %1380 = vmatprep.subr.mxu0 0.0
  %1381 = vmatpush1.msra.mxu0 0.0
  %1382 = vmatprep.subr.mxu0 0.0
  %1383 = vmatpush1.msra.mxu0 0.0
  %1384 = vmatprep.subr.mxu0 0.0
  %1385 = vmatpush1.msra.mxu0 0.0
  %1386 = vmatprep.subr.mxu0 0.0
  %1387 = vmatpush1.msra.mxu0 0.0
  %1388 = vmatprep.subr.mxu0 0.0
  %1389 = vmatpush1.msra.mxu0 0.0
  %1390 = vmatprep.subr.mxu0 0.0
  %1391 = vmatpush1.msra.mxu0 0.0
  %1392 = vmatprep.subr.mxu0 0.0
  %1393 = vmatpush1.msra.mxu0 0.0
  %1394 = vmatprep.subr.mxu0 0.0
  %1395 = vmatpush1.msra.mxu0 0.0
  %1396 = vmatprep.subr.mxu0 0.0
  %1397 = vmatpush1.msra.mxu0 0.0
  %1398 = vmatprep.subr.mxu0 0.0
  %1399 = vmatpush1.msra.mxu0 0.0
  %1400 = vmatprep.subr.mxu0 0.0
  %1401 = vmatpush1.msra.mxu0 0.0
  %1402 = vmatprep.mubr.f32.mxu0 0.0
  %1403 = vmatmul.mubr.f32.gmra.mrb[0].mxu0 %v1336
  %v1404 = vpop.f32.mrb[0].mxu0
  %v1405 = vadd.f32 %v1331, %v1404
  %v1406 = vpop.f32.mrb[0].mxu0
  %1407 = vdwg.mxu0
  %v1408 = vld [vmem:[%s12] sm:$0xff]
  %v1409 = vld [vmem:[%s12 + $0x8] sm:$0xff]
  %v1410 = vld [vmem:[%s12 + $0x10] sm:$0xff]
  %v1411 = vld [vmem:[%s12 + $0x18] sm:$0xff]
  %1412 = vmatprep.subr.mxu0 0.0
  %1413 = vmatpush1.msra.mxu0 %v1408
  %1414 = vmatprep.subr.mxu0 0.0
  %1415 = vmatpush1.msra.mxu0 %v1409
  %1416 = vmatprep.subr.mxu0 0.0
  %1417 = vmatpush1.msra.mxu0 %v1410
  %1418 = vmatprep.subr.mxu0 0.0
  %1419 = vmatpush1.msra.mxu0 %v1411
  %1420 = vmatprep.subr.mxu0 0.0
  %1421 = vmatpush1.msra.mxu0 0.0
  %1422 = vmatprep.subr.mxu0 0.0
  %1423 = vmatpush1.msra.mxu0 0.0
  %1424 = vmatprep.subr.mxu0 0.0
  %1425 = vmatpush1.msra.mxu0 0.0
  %1426 = vmatprep.subr.mxu0 0.0
  %1427 = vmatpush1.msra.mxu0 0.0
  %1428 = vmatprep.subr.mxu0 0.0
  %1429 = vmatpush1.msra.mxu0 0.0
  %1430 = vmatprep.subr.mxu0 0.0
  %1431 = vmatpush1.msra.mxu0 0.0
  %1432 = vmatprep.subr.mxu0 0.0
  %1433 = vmatpush1.msra.mxu0 0.0
  %1434 = vmatprep.subr.mxu0 0.0
  %1435 = vmatpush1.msra.mxu0 0.0
  %1436 = vmatprep.subr.mxu0 0.0
  %1437 = vmatpush1.msra.mxu0 0.0
  %1438 = vmatprep.subr.mxu0 0.0
  %1439 = vmatpush1.msra.mxu0 0.0
  %1440 = vmatprep.subr.mxu0 0.0
  %1441 = vmatpush1.msra.mxu0 0.0
  %1442 = vmatprep.subr.mxu0 0.0
  %1443 = vmatpush1.msra.mxu0 0.0
  %1444 = vmatprep.subr.mxu0 0.0
  %1445 = vmatpush1.msra.mxu0 0.0
  %1446 = vmatprep.subr.mxu0 0.0
  %1447 = vmatpush1.msra.mxu0 0.0
  %1448 = vmatprep.subr.mxu0 0.0
  %1449 = vmatpush1.msra.mxu0 0.0
  %1450 = vmatprep.subr.mxu0 0.0
  %1451 = vmatpush1.msra.mxu0 0.0
  %1452 = vmatprep.subr.mxu0 0.0
  %1453 = vmatpush1.msra.mxu0 0.0
  %1454 = vmatprep.subr.mxu0 0.0
  %1455 = vmatpush1.msra.mxu0 0.0
  %1456 = vmatprep.subr.mxu0 0.0
  %1457 = vmatpush1.msra.mxu0 0.0
  %1458 = vmatprep.subr.mxu0 0.0
  %1459 = vmatpush1.msra.mxu0 0.0
  %1460 = vmatprep.subr.mxu0 0.0
  %1461 = vmatpush1.msra.mxu0 0.0
  %1462 = vmatprep.subr.mxu0 0.0
  %1463 = vmatpush1.msra.mxu0 0.0
  %1464 = vmatprep.subr.mxu0 0.0
  %1465 = vmatpush1.msra.mxu0 0.0
  %1466 = vmatprep.subr.mxu0 0.0
  %1467 = vmatpush1.msra.mxu0 0.0
  %1468 = vmatprep.subr.mxu0 0.0
  %1469 = vmatpush1.msra.mxu0 0.0
  %1470 = vmatprep.subr.mxu0 0.0
  %1471 = vmatpush1.msra.mxu0 0.0
  %1472 = vmatprep.subr.mxu0 0.0
  %1473 = vmatpush1.msra.mxu0 0.0
  %1474 = vmatprep.subr.mxu0 0.0
  %1475 = vmatpush1.msra.mxu0 0.0
  %1476 = vmatprep.mubr.f32.mxu0 0.0
  %1477 = vmatmul.mubr.f32.gmra.mrb[0].mxu0 %v327
  %v1478 = vpop.f32.mrb[0].mxu0
  %v1479 = vadd.f32 0.0, %v1478
  %v1480 = vpop.f32.mrb[0].mxu0
  %1481 = vdwg.mxu0
  %v1482 = vadd.f32 %v1405, %v1479
  %v1483 = vxor.u32 %v1482, 2147483648
  %v1484 = vmul.f32 %v1483, 1.442695
  %v1485 = vpow.pop %v1484
  %v1486 = vadd.f32 %v1485, 1.0
  %v1487 = vrcp.pop %v1486
  %v1488 = vmul.f32 1.0, %v1487
  %v1489 = vtanh.pop %v1482
  %v1490 = vmul.f32 %v1488, 0.0
  %1492 = vrot.lane.b32.xlu0 %v1489, 64
  %v1493 = vpop.permute.xlu0 %1492
  %v1495 = vmul.f32 %v1488, %v1493
  %1497 = vrot.lane.b32.xlu0 %v1495, 32
  %v1498 = vpop.permute.xlu0 %1497
  %v1500 = vadd.f32 %v1490, %v1498
  %v1501 = vtanh.pop %v1500
  %1503 = vrot.lane.b32.xlu0 %v1501, 64
  %v1504 = vpop.permute.xlu0 %1503
  %v1506 = vmul.f32 %v1488, %v1504
  %1508 = vrot.lane.b32.xlu0 %v1506, 32
  %v1509 = vpop.permute.xlu0 %1508
  %v1510 = vsel %vm325, %v1509, 0
  %1512 = vmatprep.subr.mxu0 0.0
  %1513 = vmatpush1.msra.mxu0 %v1408
  %1514 = vmatprep.subr.mxu0 0.0
  %1515 = vmatpush1.msra.mxu0 %v1409
  %1516 = vmatprep.subr.mxu0 0.0
  %1517 = vmatpush1.msra.mxu0 %v1410
  %1518 = vmatprep.subr.mxu0 0.0
  %1519 = vmatpush1.msra.mxu0 %v1411
  %1520 = vmatprep.subr.mxu0 0.0
  %1521 = vmatpush1.msra.mxu0 0.0
  %1522 = vmatprep.subr.mxu0 0.0
  %1523 = vmatpush1.msra.mxu0 0.0
  %1524 = vmatprep.subr.mxu0 0.0
  %1525 = vmatpush1.msra.mxu0 0.0
  %1526 = vmatprep.subr.mxu0 0.0
  %1527 = vmatpush1.msra.mxu0 0.0
  %1528 = vmatprep.subr.mxu0 0.0
  %1529 = vmatpush1.msra.mxu0 0.0
  %1530 = vmatprep.subr.mxu0 0.0
  %1531 = vmatpush1.msra.mxu0 0.0
  %1532 = vmatprep.subr.mxu0 0.0
  %1533 = vmatpush1.msra.mxu0 0.0
  %1534 = vmatprep.subr.mxu0 0.0
  %1535 = vmatpush1.msra.mxu0 0.0
  %1536 = vmatprep.subr.mxu0 0.0
  %1537 = vmatpush1.msra.mxu0 0.0
  %1538 = vmatprep.subr.mxu0 0.0
  %1539 = vmatpush1.msra.mxu0 0.0
  %1540 = vmatprep.subr.mxu0 0.0
  %1541 = vmatpush1.msra.mxu0 0.0
  %1542 = vmatprep.subr.mxu0 0.0
  %1543 = vmatpush1.msra.mxu0 0.0
  %1544 = vmatprep.subr.mxu0 0.0
  %1545 = vmatpush1.msra.mxu0 0.0
  %1546 = vmatprep.subr.mxu0 0.0
  %1547 = vmatpush1.msra.mxu0 0.0
  %1548 = vmatprep.subr.mxu0 0.0
  %1549 = vmatpush1.msra.mxu0 0.0
  %1550 = vmatprep.subr.mxu0 0.0
  %1551 = vmatpush1.msra.mxu0 0.0
  %1552 = vmatprep.subr.mxu0 0.0
  %1553 = vmatpush1.msra.mxu0 0.0
  %1554 = vmatprep.subr.mxu0 0.0
  %1555 = vmatpush1.msra.mxu0 0.0
  %1556 = vmatprep.subr.mxu0 0.0
  %1557 = vmatpush1.msra.mxu0 0.0
  %1558 = vmatprep.subr.mxu0 0.0
  %1559 = vmatpush1.msra.mxu0 0.0
  %1560 = vmatprep.subr.mxu0 0.0
  %1561 = vmatpush1.msra.mxu0 0.0
  %1562 = vmatprep.subr.mxu0 0.0
  %1563 = vmatpush1.msra.mxu0 0.0
  %1564 = vmatprep.subr.mxu0 0.0
  %1565 = vmatpush1.msra.mxu0 0.0
  %1566 = vmatprep.subr.mxu0 0.0
  %1567 = vmatpush1.msra.mxu0 0.0
  %1568 = vmatprep.subr.mxu0 0.0
  %1569 = vmatpush1.msra.mxu0 0.0
  %1570 = vmatprep.subr.mxu0 0.0
  %1571 = vmatpush1.msra.mxu0 0.0
  %1572 = vmatprep.subr.mxu0 0.0
  %1573 = vmatpush1.msra.mxu0 0.0
  %1574 = vmatprep.subr.mxu0 0.0
  %1575 = vmatpush1.msra.mxu0 0.0
  %1576 = vmatprep.mubr.f32.mxu0 0.0
  %1577 = vmatmul.mubr.f32.gmra.mrb[0].mxu0 %v1510
  %v1578 = vpop.f32.mrb[0].mxu0
  %v1579 = vadd.f32 0.0, %v1578
  %v1580 = vpop.f32.mrb[0].mxu0
  %1581 = vdwg.mxu0
  %v1582 = vadd.f32 %v1405, %v1579
  %v1583 = vxor.u32 %v1582, 2147483648
  %v1584 = vmul.f32 %v1583, 1.442695
  %v1585 = vpow.pop %v1584
  %v1586 = vadd.f32 %v1585, 1.0
  %v1587 = vrcp.pop %v1586
  %v1588 = vmul.f32 1.0, %v1587
  %v1589 = vtanh.pop %v1582
  %v1590 = vmul.f32 %v1588, %v1500
  %1592 = vrot.lane.b32.xlu0 %v1589, 64
  %v1593 = vpop.permute.xlu0 %1592
  %v1595 = vmul.f32 %v1588, %v1593
  %1597 = vrot.lane.b32.xlu0 %v1595, 32
  %v1598 = vpop.permute.xlu0 %1597
  %v1600 = vadd.f32 %v1590, %v1598
  %v1601 = vtanh.pop %v1600
  %1603 = vrot.lane.b32.xlu0 %v1601, 64
  %v1604 = vpop.permute.xlu0 %1603
  %v1606 = vmul.f32 %v1588, %v1604
  %1608 = vrot.lane.b32.xlu0 %v1606, 32
  %v1609 = vpop.permute.xlu0 %1608
  %v1610 = vsel %vm325, %v1609, 0
  %1612 = vmatprep.subr.mxu0 0.0
  %1613 = vmatpush1.msra.mxu0 %v1408
  %1614 = vmatprep.subr.mxu0 0.0
  %1615 = vmatpush1.msra.mxu0 %v1409
  %1616 = vmatprep.subr.mxu0 0.0
  %1617 = vmatpush1.msra.mxu0 %v1410
  %1618 = vmatprep.subr.mxu0 0.0
  %1619 = vmatpush1.msra.mxu0 %v1411
  %1620 = vmatprep.subr.mxu0 0.0
  %1621 = vmatpush1.msra.mxu0 0.0
  %1622 = vmatprep.subr.mxu0 0.0
  %1623 = vmatpush1.msra.mxu0 0.0
  %1624 = vmatprep.subr.mxu0 0.0
  %1625 = vmatpush1.msra.mxu0 0.0
  %1626 = vmatprep.subr.mxu0 0.0
  %1627 = vmatpush1.msra.mxu0 0.0
  %1628 = vmatprep.subr.mxu0 0.0
  %1629 = vmatpush1.msra.mxu0 0.0
  %1630 = vmatprep.subr.mxu0 0.0
  %1631 = vmatpush1.msra.mxu0 0.0
  %1632 = vmatprep.subr.mxu0 0.0
  %1633 = vmatpush1.msra.mxu0 0.0
  %1634 = vmatprep.subr.mxu0 0.0
  %1635 = vmatpush1.msra.mxu0 0.0
  %1636 = vmatprep.subr.mxu0 0.0
  %1637 = vmatpush1.msra.mxu0 0.0
  %1638 = vmatprep.subr.mxu0 0.0
  %1639 = vmatpush1.msra.mxu0 0.0
  %1640 = vmatprep.subr.mxu0 0.0
  %1641 = vmatpush1.msra.mxu0 0.0
  %1642 = vmatprep.subr.mxu0 0.0
  %1643 = vmatpush1.msra.mxu0 0.0
  %1644 = vmatprep.subr.mxu0 0.0
  %1645 = vmatpush1.msra.mxu0 0.0
  %1646 = vmatprep.subr.mxu0 0.0
  %1647 = vmatpush1.msra.mxu0 0.0
  %1648 = vmatprep.subr.mxu0 0.0
  %1649 = vmatpush1.msra.mxu0 0.0
  %1650 = vmatprep.subr.mxu0 0.0
  %1651 = vmatpush1.msra.mxu0 0.0
  %1652 = vmatprep.subr.mxu0 0.0
  %1653 = vmatpush1.msra.mxu0 0.0
  %1654 = vmatprep.subr.mxu0 0.0
  %1655 = vmatpush1.msra.mxu0 0.0
  %1656 = vmatprep.subr.mxu0 0.0
  %1657 = vmatpush1.msra.mxu0 0.0
  %1658 = vmatprep.subr.mxu0 0.0
  %1659 = vmatpush1.msra.mxu0 0.0
  %1660 = vmatprep.subr.mxu0 0.0
  %1661 = vmatpush1.msra.mxu0 0.0
  %1662 = vmatprep.subr.mxu0 0.0
  %1663 = vmatpush1.msra.mxu0 0.0
  %1664 = vmatprep.subr.mxu0 0.0
  %1665 = vmatpush1.msra.mxu0 0.0
  %1666 = vmatprep.subr.mxu0 0.0
  %1667 = vmatpush1.msra.mxu0 0.0
  %1668 = vmatprep.subr.mxu0 0.0
  %1669 = vmatpush1.msra.mxu0 0.0
  %1670 = vmatprep.subr.mxu0 0.0
  %1671 = vmatpush1.msra.mxu0 0.0
  %1672 = vmatprep.subr.mxu0 0.0
  %1673 = vmatpush1.msra.mxu0 0.0
  %1674 = vmatprep.subr.mxu0 0.0
  %1675 = vmatpush1.msra.mxu0 0.0
  %1676 = vmatprep.mubr.f32.mxu0 0.0
  %1677 = vmatmul.mubr.f32.gmra.mrb[0].mxu0 %v1610
  %v1678 = vpop.f32.mrb[0].mxu0
  %v1679 = vadd.f32 0.0, %v1678
  %v1680 = vpop.f32.mrb[0].mxu0
  %1681 = vdwg.mxu0
  %v1682 = vadd.f32 %v1405, %v1679
  %v1683 = vxor.u32 %v1682, 2147483648
  %v1684 = vmul.f32 %v1683, 1.442695
  %v1685 = vpow.pop %v1684
  %v1686 = vadd.f32 %v1685, 1.0
  %v1687 = vrcp.pop %v1686
  %v1688 = vmul.f32 1.0, %v1687
  %v1689 = vtanh.pop %v1682
  %v1690 = vmul.f32 %v1688, %v1600
  %1692 = vrot.lane.b32.xlu0 %v1689, 64
  %v1693 = vpop.permute.xlu0 %1692
  %v1695 = vmul.f32 %v1688, %v1693
  %1697 = vrot.lane.b32.xlu0 %v1695, 32
  %v1698 = vpop.permute.xlu0 %1697
  %v1700 = vadd.f32 %v1690, %v1698
  %v1701 = vtanh.pop %v1700
  %1703 = vrot.lane.b32.xlu0 %v1701, 64
  %v1704 = vpop.permute.xlu0 %1703
  %v1706 = vmul.f32 %v1688, %v1704
  %1708 = vrot.lane.b32.xlu0 %v1706, 32
  %v1709 = vpop.permute.xlu0 %1708
  %v1710 = vsel %vm325, %v1709, 0
  %1712 = vmatprep.subr.mxu0 0.0
  %1713 = vmatpush1.msra.mxu0 %v1408
  %1714 = vmatprep.subr.mxu0 0.0
  %1715 = vmatpush1.msra.mxu0 %v1409
  %1716 = vmatprep.subr.mxu0 0.0
  %1717 = vmatpush1.msra.mxu0 %v1410
  %1718 = vmatprep.subr.mxu0 0.0
  %1719 = vmatpush1.msra.mxu0 %v1411
  %1720 = vmatprep.subr.mxu0 0.0
  %1721 = vmatpush1.msra.mxu0 0.0
  %1722 = vmatprep.subr.mxu0 0.0
  %1723 = vmatpush1.msra.mxu0 0.0
  %1724 = vmatprep.subr.mxu0 0.0
  %1725 = vmatpush1.msra.mxu0 0.0
  %1726 = vmatprep.subr.mxu0 0.0
  %1727 = vmatpush1.msra.mxu0 0.0
  %1728 = vmatprep.subr.mxu0 0.0
  %1729 = vmatpush1.msra.mxu0 0.0
  %1730 = vmatprep.subr.mxu0 0.0
  %1731 = vmatpush1.msra.mxu0 0.0
  %1732 = vmatprep.subr.mxu0 0.0
  %1733 = vmatpush1.msra.mxu0 0.0
  %1734 = vmatprep.subr.mxu0 0.0
  %1735 = vmatpush1.msra.mxu0 0.0
  %1736 = vmatprep.subr.mxu0 0.0
  %1737 = vmatpush1.msra.mxu0 0.0
  %1738 = vmatprep.subr.mxu0 0.0
  %1739 = vmatpush1.msra.mxu0 0.0
  %1740 = vmatprep.subr.mxu0 0.0
  %1741 = vmatpush1.msra.mxu0 0.0
  %1742 = vmatprep.subr.mxu0 0.0
  %1743 = vmatpush1.msra.mxu0 0.0
  %1744 = vmatprep.subr.mxu0 0.0
  %1745 = vmatpush1.msra.mxu0 0.0
  %1746 = vmatprep.subr.mxu0 0.0
  %1747 = vmatpush1.msra.mxu0 0.0
  %1748 = vmatprep.subr.mxu0 0.0
  %1749 = vmatpush1.msra.mxu0 0.0
  %1750 = vmatprep.subr.mxu0 0.0
  %1751 = vmatpush1.msra.mxu0 0.0
  %1752 = vmatprep.subr.mxu0 0.0
  %1753 = vmatpush1.msra.mxu0 0.0
  %1754 = vmatprep.subr.mxu0 0.0
  %1755 = vmatpush1.msra.mxu0 0.0
  %1756 = vmatprep.subr.mxu0 0.0
  %1757 = vmatpush1.msra.mxu0 0.0
  %1758 = vmatprep.subr.mxu0 0.0
  %1759 = vmatpush1.msra.mxu0 0.0
  %1760 = vmatprep.subr.mxu0 0.0
  %1761 = vmatpush1.msra.mxu0 0.0
  %1762 = vmatprep.subr.mxu0 0.0
  %1763 = vmatpush1.msra.mxu0 0.0
  %1764 = vmatprep.subr.mxu0 0.0
  %1765 = vmatpush1.msra.mxu0 0.0
  %1766 = vmatprep.subr.mxu0 0.0
  %1767 = vmatpush1.msra.mxu0 0.0
  %1768 = vmatprep.subr.mxu0 0.0
  %1769 = vmatpush1.msra.mxu0 0.0
  %1770 = vmatprep.subr.mxu0 0.0
  %1771 = vmatpush1.msra.mxu0 0.0
  %1772 = vmatprep.subr.mxu0 0.0
  %1773 = vmatpush1.msra.mxu0 0.0
  %1774 = vmatprep.subr.mxu0 0.0
  %1775 = vmatpush1.msra.mxu0 0.0
  %1776 = vmatprep.mubr.f32.mxu0 0.0
  %1777 = vmatmul.mubr.f32.gmra.mrb[0].mxu0 %v1710
  %v1778 = vpop.f32.mrb[0].mxu0
  %v1779 = vadd.f32 0.0, %v1778
  %v1780 = vpop.f32.mrb[0].mxu0
  %1781 = vdwg.mxu0
  %v1782 = vadd.f32 %v1405, %v1779
  %v1783 = vxor.u32 %v1782, 2147483648
  %v1784 = vmul.f32 %v1783, 1.442695
  %v1785 = vpow.pop %v1784
  %v1786 = vadd.f32 %v1785, 1.0
  %v1787 = vrcp.pop %v1786
  %v1788 = vmul.f32 1.0, %v1787
  %v1789 = vtanh.pop %v1782
  %v1790 = vmul.f32 %v1788, %v1700
  %1792 = vrot.lane.b32.xlu0 %v1789, 64
  %v1793 = vpop.permute.xlu0 %1792
  %v1795 = vmul.f32 %v1788, %v1793
  %1797 = vrot.lane.b32.xlu0 %v1795, 32
  %v1798 = vpop.permute.xlu0 %1797
  %v1800 = vadd.f32 %v1790, %v1798
  %v1801 = vtanh.pop %v1800
  %1803 = vrot.lane.b32.xlu0 %v1801, 64
  %v1804 = vpop.permute.xlu0 %1803
  %v1806 = vmul.f32 %v1788, %v1804
  %1808 = vrot.lane.b32.xlu0 %v1806, 32
  %v1809 = vpop.permute.xlu0 %1808
  %v1810 = vsel %vm325, %v1809, 0
  %1812 = vmatprep.subr.mxu0 0.0
  %1813 = vmatpush1.msra.mxu0 %v1408
  %1814 = vmatprep.subr.mxu0 0.0
  %1815 = vmatpush1.msra.mxu0 %v1409
  %1816 = vmatprep.subr.mxu0 0.0
  %1817 = vmatpush1.msra.mxu0 %v1410
  %1818 = vmatprep.subr.mxu0 0.0
  %1819 = vmatpush1.msra.mxu0 %v1411
  %1820 = vmatprep.subr.mxu0 0.0
  %1821 = vmatpush1.msra.mxu0 0.0
  %1822 = vmatprep.subr.mxu0 0.0
  %1823 = vmatpush1.msra.mxu0 0.0
  %1824 = vmatprep.subr.mxu0 0.0
  %1825 = vmatpush1.msra.mxu0 0.0
  %1826 = vmatprep.subr.mxu0 0.0
  %1827 = vmatpush1.msra.mxu0 0.0
  %1828 = vmatprep.subr.mxu0 0.0
  %1829 = vmatpush1.msra.mxu0 0.0
  %1830 = vmatprep.subr.mxu0 0.0
  %1831 = vmatpush1.msra.mxu0 0.0
  %1832 = vmatprep.subr.mxu0 0.0
  %1833 = vmatpush1.msra.mxu0 0.0
  %1834 = vmatprep.subr.mxu0 0.0
  %1835 = vmatpush1.msra.mxu0 0.0
  %1836 = vmatprep.subr.mxu0 0.0
  %1837 = vmatpush1.msra.mxu0 0.0
  %1838 = vmatprep.subr.mxu0 0.0
  %1839 = vmatpush1.msra.mxu0 0.0
  %1840 = vmatprep.subr.mxu0 0.0
  %1841 = vmatpush1.msra.mxu0 0.0
  %1842 = vmatprep.subr.mxu0 0.0
  %1843 = vmatpush1.msra.mxu0 0.0
  %1844 = vmatprep.subr.mxu0 0.0
  %1845 = vmatpush1.msra.mxu0 0.0
  %1846 = vmatprep.subr.mxu0 0.0
  %1847 = vmatpush1.msra.mxu0 0.0
  %1848 = vmatprep.subr.mxu0 0.0
  %1849 = vmatpush1.msra.mxu0 0.0
  %1850 = vmatprep.subr.mxu0 0.0
  %1851 = vmatpush1.msra.mxu0 0.0
  %1852 = vmatprep.subr.mxu0 0.0
  %1853 = vmatpush1.msra.mxu0 0.0
  %1854 = vmatprep.subr.mxu0 0.0
  %1855 = vmatpush1.msra.mxu0 0.0
  %1856 = vmatprep.subr.mxu0 0.0
  %1857 = vmatpush1.msra.mxu0 0.0
  %1858 = vmatprep.subr.mxu0 0.0
  %1859 = vmatpush1.msra.mxu0 0.0
  %1860 = vmatprep.subr.mxu0 0.0
  %1861 = vmatpush1.msra.mxu0 0.0
  %1862 = vmatprep.subr.mxu0 0.0
  %1863 = vmatpush1.msra.mxu0 0.0
  %1864 = vmatprep.subr.mxu0 0.0
  %1865 = vmatpush1.msra.mxu0 0.0
  %1866 = vmatprep.subr.mxu0 0.0
  %1867 = vmatpush1.msra.mxu0 0.0
  %1868 = vmatprep.subr.mxu0 0.0
  %1869 = vmatpush1.msra.mxu0 0.0
  %1870 = vmatprep.subr.mxu0 0.0
  %1871 = vmatpush1.msra.mxu0 0.0
  %1872 = vmatprep.subr.mxu0 0.0
  %1873 = vmatpush1.msra.mxu0 0.0
  %1874 = vmatprep.subr.mxu0 0.0
  %1875 = vmatpush1.msra.mxu0 0.0
  %1876 = vmatprep.mubr.f32.mxu0 0.0
  %1877 = vmatmul.mubr.f32.gmra.mrb[0].mxu0 %v1810
  %v1878 = vpop.f32.mrb[0].mxu0
  %v1879 = vadd.f32 0.0, %v1878
  %v1880 = vpop.f32.mrb[0].mxu0
  %1881 = vdwg.mxu0
  %v1882 = vadd.f32 %v1405, %v1879
  %v1883 = vxor.u32 %v1882, 2147483648
  %v1884 = vmul.f32 %v1883, 1.442695
  %v1885 = vpow.pop %v1884
  %v1886 = vadd.f32 %v1885, 1.0
  %v1887 = vrcp.pop %v1886
  %v1888 = vmul.f32 1.0, %v1887
  %v1889 = vtanh.pop %v1882
  %v1890 = vmul.f32 %v1888, %v1800
  %1892 = vrot.lane.b32.xlu0 %v1889, 64
  %v1893 = vpop.permute.xlu0 %1892
  %v1895 = vmul.f32 %v1888, %v1893
  %1897 = vrot.lane.b32.xlu0 %v1895, 32
  %v1898 = vpop.permute.xlu0 %1897
  %v1900 = vadd.f32 %v1890, %v1898
  %v1901 = vtanh.pop %v1900
  %1903 = vrot.lane.b32.xlu0 %v1901, 64
  %v1904 = vpop.permute.xlu0 %1903
  %v1906 = vmul.f32 %v1888, %v1904
  %v1907 = vrot.slane %v1606, 6
  %v1909 = vrot.slane %v1706, 4
  %v1911 = vrot.slane %v1806, 2
  %v1913 = vsel %vm1161, %v1506, %v1907
  %vm1914 = vcmask 1043456
  %v1915 = vsel %vm1914, %v1913, %v1909
  %vm1916 = vcmask 1045504
  %v1917 = vsel %vm1916, %v1915, %v1911
  %v1918 = vld [vmem:[%s14] sm:$0xff]
  %v1919 = vld [vmem:[%s14 + $0x8] sm:$0xff]
  %v1920 = vld [vmem:[%s14 + $0x10] sm:$0xff]
  %v1921 = vld [vmem:[%s14 + $0x18] sm:$0xff]
  %v1922 = vld [vmem:[%s15] sm:$0x1]
  %v1924 = vlaneseq
  %v1925 = vshrl.u32 %v1924, 7
  %v1926 = vsub.s32 0, %v1925
  %v1927 = vrot.slane %v1922, %v1926
  %1931 = vrot.lane.b32.xlu0 %v1917, 32
  %v1932 = vpop.permute.xlu0 %1931
  %1933 = vrot.lane.b32.xlu0 %v1906, 32
  %v1934 = vpop.permute.xlu0 %1933
  %v1935 = vsel %vm325, %v1932, 0
  %v1937 = vsel %vm325, %v1934, 0
  %1939 = vmatprep.subr.mxu0 0.0
  %1940 = vmatpush1.msra.mxu0 %v1918
  %1941 = vmatprep.subr.mxu0 0.0
  %1942 = vmatpush1.msra.mxu0 %v1919
  %1943 = vmatprep.subr.mxu0 0.0
  %1944 = vmatpush1.msra.mxu0 %v1920
  %1945 = vmatprep.subr.mxu0 0.0
  %1946 = vmatpush1.msra.mxu0 %v1921
  %1947 = vmatprep.subr.mxu0 0.0
  %1948 = vmatpush1.msra.mxu0 0.0
  %1949 = vmatprep.subr.mxu0 0.0
  %1950 = vmatpush1.msra.mxu0 0.0
  %1951 = vmatprep.subr.mxu0 0.0
  %1952 = vmatpush1.msra.mxu0 0.0
  %1953 = vmatprep.subr.mxu0 0.0
  %1954 = vmatpush1.msra.mxu0 0.0
  %1955 = vmatprep.subr.mxu0 0.0
  %1956 = vmatpush1.msra.mxu0 0.0
  %1957 = vmatprep.subr.mxu0 0.0
  %1958 = vmatpush1.msra.mxu0 0.0
  %1959 = vmatprep.subr.mxu0 0.0
  %1960 = vmatpush1.msra.mxu0 0.0
  %1961 = vmatprep.subr.mxu0 0.0
  %1962 = vmatpush1.msra.mxu0 0.0
  %1963 = vmatprep.subr.mxu0 0.0
  %1964 = vmatpush1.msra.mxu0 0.0
  %1965 = vmatprep.subr.mxu0 0.0
  %1966 = vmatpush1.msra.mxu0 0.0
  %1967 = vmatprep.subr.mxu0 0.0
  %1968 = vmatpush1.msra.mxu0 0.0
  %1969 = vmatprep.subr.mxu0 0.0
  %1970 = vmatpush1.msra.mxu0 0.0
  %1971 = vmatprep.subr.mxu0 0.0
  %1972 = vmatpush1.msra.mxu0 0.0
  %1973 = vmatprep.subr.mxu0 0.0
  %1974 = vmatpush1.msra.mxu0 0.0
  %1975 = vmatprep.subr.mxu0 0.0
  %1976 = vmatpush1.msra.mxu0 0.0
  %1977 = vmatprep.subr.mxu0 0.0
  %1978 = vmatpush1.msra.mxu0 0.0
  %1979 = vmatprep.subr.mxu0 0.0
  %1980 = vmatpush1.msra.mxu0 0.0
  %1981 = vmatprep.subr.mxu0 0.0
  %1982 = vmatpush1.msra.mxu0 0.0
  %1983 = vmatprep.subr.mxu0 0.0
  %1984 = vmatpush1.msra.mxu0 0.0
  %1985 = vmatprep.subr.mxu0 0.0
  %1986 = vmatpush1.msra.mxu0 0.0
  %1987 = vmatprep.subr.mxu0 0.0
  %1988 = vmatpush1.msra.mxu0 0.0
  %1989 = vmatprep.subr.mxu0 0.0
  %1990 = vmatpush1.msra.mxu0 0.0
  %1991 = vmatprep.subr.mxu0 0.0
  %1992 = vmatpush1.msra.mxu0 0.0
  %1993 = vmatprep.subr.mxu0 0.0
  %1994 = vmatpush1.msra.mxu0 0.0
  %1995 = vmatprep.subr.mxu0 0.0
  %1996 = vmatpush1.msra.mxu0 0.0
  %1997 = vmatprep.subr.mxu0 0.0
  %1998 = vmatpush1.msra.mxu0 0.0
  %1999 = vmatprep.subr.mxu0 0.0
  %2000 = vmatpush1.msra.mxu0 0.0
  %2001 = vmatprep.subr.mxu0 0.0
  %2002 = vmatpush1.msra.mxu0 0.0
  %2003 = vmatprep.mubr.f32.mxu0 0.0
  %2004 = vmatmul.mubr.f32.gmra.mrb[0].mxu0 %v1935
  %v2005 = vpop.f32.mrb[0].mxu0
  %v2006 = vadd.f32 %v1927, %v2005
  %v2007 = vpop.f32.mrb[0].mxu0
  %2008 = vmatprep.mubr.f32.mxu0 0.0
  %2009 = vmatmul.mubr.f32.gmra.mrb[0].mxu0 %v1937
  %v2010 = vpop.f32.mrb[0].mxu0
  %v2011 = vadd.f32 %v1927, %v2010
  %v2012 = vpop.f32.mrb[0].mxu0
  %2013 = vdwg.mxu0
  %2014 = vst.msk [vmem:[%s16] sm:$0xff] %vm1154, %v2006
  %vm2015 = vcmask 9216
  %2016 = vst.msk [vmem:[%s16 + $0x8] sm:$0x3] %vm2015, %v2011
  // Predicated region
  $region66: #{trajectory_network_forward.1} parent=0 // pred_check
    _
  $region67: #{trajectory_network_forward.1} parent=0 // pred_check_branch
    %2018 = sbr.rel (0) target = $region69
  $region68: #{trajectory_network_forward.1} parent=0 // pred_region
    _
  $region69: #{trajectory_network_forward.1} parent=0 // pred_fallthru
    _
  // Predicated region
  $region70: #{trajectory_network_forward.1} parent=0 // pred_check
    _
  $region71: #{trajectory_network_forward.1} parent=0 // pred_check_branch
    %2020 = sbr.rel (0) target = $region73
  $region72: #{trajectory_network_forward.1} parent=0 // pred_region
    _
  $region73: #{trajectory_network_forward.1} parent=0 // pred_fallthru
    _

</llo_original>
